<compile_context>
chip_gen: v7x
topology: tpu7x:2x2x1
jax: 0.10.0
libtpu: 0.0.40
codegen_flags: <defaults>
</compile_context>

<pallas_src>
import functools

import jax
import jax.numpy as jnp
from jax.experimental import pallas as pl
from jax.experimental.pallas import tpu as pltpu


def _round_up(x, m):
    return ((x + m - 1) // m) * m


def _lstm_kernel(x_ref, wih_ref, whh_ref, b_ref, h_out_ref, proj_sc):
    """Full LSTM forward in one invocation.  Gate blocks are [i, f, o, g]."""
    T, Bp, I = x_ref.shape
    Hp = proj_sc.shape[-1] // 4

    # ---- Hoisted input projection: proj[t, b] = x[t, b] @ W_ih^T + (b_ih+b_hh)
    # K = I = 3, so 3 broadcast-FMAs on the VPU beat an MXU pass and keep the
    # MXU free for the serial recurrence.  Bias add is fused into the init.
    x = x_ref[...]                                           # (T, Bp, I)
    proj = b_ref[...].reshape(1, 1, 4 * Hp)
    for k in range(I):
        proj = proj + x[:, :, k:k + 1] * wih_ref[k:k + 1, :].reshape(1, 1, 4 * Hp)
    proj_sc[...] = proj                                      # (T, Bp, 4*Hp)

    # ---- Peeled t = 0 (h = c = 0: skip h @ W_hh and f*c) ----
    g0 = proj_sc[0]                                          # (Bp, 4*Hp)
    s0 = jax.nn.sigmoid(g0[:, :3 * Hp])                      # fused [i | f | o]
    c = s0[:, :Hp] * jnp.tanh(g0[:, 3 * Hp:])                # c1 = i * g
    h = s0[:, 2 * Hp:] * jnp.tanh(c)                         # h1 = o * tanh(c1)

    # ---- t = 1 .. T-1: statically unrolled serial recurrence ----
    for t in range(1, T):
        gates = proj_sc[t] + jnp.dot(h, whh_ref[...],
                                     preferred_element_type=jnp.float32)
        s = jax.nn.sigmoid(gates[:, :3 * Hp])                # fused [i | f | o]
        g_g = jnp.tanh(gates[:, 3 * Hp:])
        c = s[:, Hp:2 * Hp] * c + s[:, :Hp] * g_g            # c = f*c + i*g
        h = s[:, 2 * Hp:] * jnp.tanh(c)                      # h = o * tanh(c)

    h_out_ref[...] = h                                       # (8, 128) unmasked


_GATE_REORDER = (0, 1, 3, 2)   # PyTorch [i, f, g, o] -> kernel [i, f, o, g]


def prepare_encoder_params(w_ih, w_hh, b_ih, b_hh, hidden_dim):
    """One-time layout prep (call at model init, NOT per forward):
    transpose, reorder gate blocks to [i, f, o, g], zero-pad each gate block to
    a whole 128-lane vreg, and pad the recurrent contraction dim to Hp."""
    H = hidden_dim
    Hp = _round_up(H, 128)

    def prep_cols(a):                       # a: (rows, 4H) -> (rows, 4Hp)
        rows = a.shape[0]
        a4 = a.reshape(rows, 4, H)[:, _GATE_REORDER, :]
        a4 = jnp.pad(a4, ((0, 0), (0, 0), (0, Hp - H)))
        return a4.reshape(rows, 4 * Hp)

    wih_t = prep_cols(jnp.transpose(w_ih).astype(jnp.float32))            # (I,  4Hp)
    whh_t = prep_cols(jnp.transpose(w_hh).astype(jnp.float32))            # (H,  4Hp)
    whh_t = jnp.pad(whh_t, ((0, Hp - H), (0, 0)))                         # (Hp, 4Hp)
    bias = prep_cols((b_ih + b_hh).astype(jnp.float32).reshape(1, 4 * H)) # (1,  4Hp)
    return wih_t, whh_t, bias


@functools.partial(jax.jit, static_argnames=("hidden_dim",))
def encoder_forward(obs_traj, wih_t, whh_t, bias, *, hidden_dim):
    """obs_traj: (T, B, 3) f32; (wih_t, whh_t, bias) from prepare_encoder_params.
    Returns h_n: (num_layers=1, B, hidden_dim) f32."""
    T, B, I = obs_traj.shape
    H = hidden_dim
    Hp = whh_t.shape[0]             # padded hidden (multiple of 128)
    Bp = _round_up(B, 8)            # batch -> whole 8-sublane tile

    # Only per-call layout op: pad the tiny activation tensor's batch rows.
    x_p = jnp.pad(obs_traj.astype(jnp.float32), ((0, 0), (0, Bp - B), (0, 0)))

    vmem = pl.BlockSpec(memory_space=pltpu.MemorySpace.VMEM)
    h_pad = pl.pallas_call(
        _lstm_kernel,
        out_shape=jax.ShapeDtypeStruct((Bp, Hp), jnp.float32),
        in_specs=[vmem, vmem, vmem, vmem],
        out_specs=vmem,
        scratch_shapes=[pltpu.VMEM((T, Bp, 4 * Hp), jnp.float32)],  # hoisted x-proj
    )(x_p, wih_t, whh_t, bias)

    return h_pad[:B, :H][None, :, :]   # (num_layers=1, B, H)


def _reference_lstm(obs_traj, w_ih, w_hh, b_ih, b_hh, hidden_dim):
    """Pure-JAX reference mirroring torch.nn.LSTM (single layer, h0=c0=0)."""
    T, B, _ = obs_traj.shape
    H = hidden_dim
    h = jnp.zeros((B, H), jnp.float32)
    c = jnp.zeros((B, H), jnp.float32)

    def step(carry, x_t):
        h, c = carry
        gates = x_t @ w_ih.T + h @ w_hh.T + b_ih + b_hh
        i = jax.nn.sigmoid(gates[:, 0 * H:1 * H])
        f = jax.nn.sigmoid(gates[:, 1 * H:2 * H])
        g = jnp.tanh(gates[:, 2 * H:3 * H])
        o = jax.nn.sigmoid(gates[:, 3 * H:4 * H])
        c = f * c + i * g
        h = o * jnp.tanh(c)
        return (h, c), None

    (h, c), _ = jax.lax.scan(step, (h, c), obs_traj)
    return h[None, :, :]


if __name__ == "__main__":
    # Shapes consistent with the module: obs_len=8, batch=4, input=3, hidden=64.
    T, B, I, H = 8, 4, 3, 64

    key = jax.random.PRNGKey(0)
    k_x, k_wi, k_wh, k_bi, k_bh = jax.random.split(key, 5)

    obs_traj = jax.random.normal(k_x, (T, B, I), dtype=jnp.float32)

    # Deterministic parameter init (same shapes as nn.LSTM(3, 64, 1)).
    scale = 1.0 / jnp.sqrt(jnp.float32(H))
    w_ih = jax.random.uniform(k_wi, (4 * H, I), jnp.float32, -scale, scale)
    w_hh = jax.random.uniform(k_wh, (4 * H, H), jnp.float32, -scale, scale)
    b_ih = jax.random.uniform(k_bi, (4 * H,), jnp.float32, -scale, scale)
    b_hh = jax.random.uniform(k_bh, (4 * H,), jnp.float32, -scale, scale)

    # One-time layout prep, hoisted out of the per-call path.
    wih_t, whh_t, bias = prepare_encoder_params(w_ih, w_hh, b_ih, b_hh, H)

    h_n = encoder_forward(obs_traj, wih_t, whh_t, bias, hidden_dim=H)
    h_n = jax.block_until_ready(h_n)

    h_ref = _reference_lstm(obs_traj, w_ih, w_hh, b_ih, b_hh, H)
    assert h_n.shape == (1, B, H), h_n.shape
    assert jnp.allclose(h_n, h_ref, atol=2e-5, rtol=2e-5), "mismatch vs reference"

    print("KERNEL_OK")
</pallas_src>

<mosaic_0001>
module attributes {stable_mosaic.version = 11 : i64} {
  func.func @_lstm_kernel(%arg0: memref<8x8x3xf32, #tpu.memory_space<vmem>>, %arg1: memref<3x512xf32, #tpu.memory_space<vmem>>, %arg2: memref<128x512xf32, #tpu.memory_space<vmem>>, %arg3: memref<1x512xf32, #tpu.memory_space<vmem>>, %arg4: memref<8x128xf32, #tpu.memory_space<vmem>>, %arg5: memref<8x8x512xf32, #tpu.memory_space<vmem>>) attributes {dimension_semantics = [], scalar_prefetch = 0 : i64, scratch_operands = 1 : i64, tpu.core_type = #tpu.core_type<tc>} {
    %c0 = arith.constant 0 : index
    %c0_0 = arith.constant 0 : index
    %c0_1 = arith.constant 0 : index
    %0 = vector.load %arg0[%c0, %c0_0, %c0_1] : memref<8x8x3xf32, #tpu.memory_space<vmem>>, vector<8x8x3xf32>
    %c0_2 = arith.constant 0 : index
    %c0_3 = arith.constant 0 : index
    %1 = vector.load %arg3[%c0_2, %c0_3] : memref<1x512xf32, #tpu.memory_space<vmem>>, vector<1x512xf32>
    %2 = vector.shape_cast %1 : vector<1x512xf32> to vector<1x1x512xf32>
    %3 = vector.extract_strided_slice %0 {offsets = [0, 0, 0], sizes = [8, 8, 1], strides = [1, 1, 1]} : vector<8x8x3xf32> to vector<8x8x1xf32>
    %c0_4 = arith.constant 0 : index
    %c0_5 = arith.constant 0 : index
    %4 = vector.load %arg1[%c0_4, %c0_5] : memref<3x512xf32, #tpu.memory_space<vmem>>, vector<1x512xf32>
    %5 = vector.shape_cast %4 : vector<1x512xf32> to vector<1x1x512xf32>
    %6 = vector.broadcast %3 : vector<8x8x1xf32> to vector<8x8x512xf32>
    %7 = vector.broadcast %5 : vector<1x1x512xf32> to vector<8x8x512xf32>
    %8 = arith.mulf %6, %7 : vector<8x8x512xf32>
    %9 = vector.broadcast %2 : vector<1x1x512xf32> to vector<8x8x512xf32>
    %10 = arith.addf %9, %8 : vector<8x8x512xf32>
    %11 = vector.extract_strided_slice %0 {offsets = [0, 0, 1], sizes = [8, 8, 1], strides = [1, 1, 1]} : vector<8x8x3xf32> to vector<8x8x1xf32>
    %c1 = arith.constant 1 : index
    %c0_6 = arith.constant 0 : index
    %12 = vector.load %arg1[%c1, %c0_6] : memref<3x512xf32, #tpu.memory_space<vmem>>, vector<1x512xf32>
    %13 = vector.shape_cast %12 : vector<1x512xf32> to vector<1x1x512xf32>
    %14 = vector.broadcast %11 : vector<8x8x1xf32> to vector<8x8x512xf32>
    %15 = vector.broadcast %13 : vector<1x1x512xf32> to vector<8x8x512xf32>
    %16 = arith.mulf %14, %15 : vector<8x8x512xf32>
    %17 = arith.addf %10, %16 : vector<8x8x512xf32>
    %18 = vector.extract_strided_slice %0 {offsets = [0, 0, 2], sizes = [8, 8, 1], strides = [1, 1, 1]} : vector<8x8x3xf32> to vector<8x8x1xf32>
    %c2 = arith.constant 2 : index
    %c0_7 = arith.constant 0 : index
    %19 = vector.load %arg1[%c2, %c0_7] : memref<3x512xf32, #tpu.memory_space<vmem>>, vector<1x512xf32>
    %20 = vector.shape_cast %19 : vector<1x512xf32> to vector<1x1x512xf32>
    %21 = vector.broadcast %18 : vector<8x8x1xf32> to vector<8x8x512xf32>
    %22 = vector.broadcast %20 : vector<1x1x512xf32> to vector<8x8x512xf32>
    %23 = arith.mulf %21, %22 : vector<8x8x512xf32>
    %24 = arith.addf %17, %23 : vector<8x8x512xf32>
    %c0_8 = arith.constant 0 : index
    %c0_9 = arith.constant 0 : index
    %c0_10 = arith.constant 0 : index
    %25 = vector.load %arg5[%c0_8, %c0_9, %c0_10] : memref<8x8x512xf32, #tpu.memory_space<vmem>>, vector<8x8x512xf32>
    tpu.vector_store %arg5[%c0_8, %c0_9, %c0_10], %24 {strides = array<i32>} : memref<8x8x512xf32, #tpu.memory_space<vmem>>, vector<8x8x512xf32>,
    %c0_11 = arith.constant 0 : index
    %c0_12 = arith.constant 0 : index
    %c0_13 = arith.constant 0 : index
    %26 = vector.load %arg5[%c0_11, %c0_12, %c0_13] : memref<8x8x512xf32, #tpu.memory_space<vmem>>, vector<1x8x512xf32>
    %27 = vector.shape_cast %26 : vector<1x8x512xf32> to vector<8x512xf32>
    %28 = vector.extract_strided_slice %27 {offsets = [0, 0], sizes = [8, 384], strides = [1, 1]} : vector<8x512xf32> to vector<8x384xf32>
    %29 = arith.negf %28 : vector<8x384xf32>
    %30 = math.exp %29 : vector<8x384xf32>
    %cst = arith.constant 1.000000e+00 : f32
    %31 = vector.broadcast %cst : f32 to vector<8x384xf32>
    %32 = arith.addf %31, %30 : vector<8x384xf32>
    %33 = arith.divf %31, %32 : vector<8x384xf32>
    %34 = vector.extract_strided_slice %33 {offsets = [0, 0], sizes = [8, 128], strides = [1, 1]} : vector<8x384xf32> to vector<8x128xf32>
    %35 = vector.extract_strided_slice %27 {offsets = [0, 384], sizes = [8, 128], strides = [1, 1]} : vector<8x512xf32> to vector<8x128xf32>
    %36 = math.tanh %35 : vector<8x128xf32>
    %37 = arith.mulf %34, %36 : vector<8x128xf32>
    %38 = vector.extract_strided_slice %33 {offsets = [0, 256], sizes = [8, 128], strides = [1, 1]} : vector<8x384xf32> to vector<8x128xf32>
    %39 = math.tanh %37 : vector<8x128xf32>
    %40 = arith.mulf %38, %39 : vector<8x128xf32>
    %c1_14 = arith.constant 1 : index
    %c0_15 = arith.constant 0 : index
    %c0_16 = arith.constant 0 : index
    %41 = vector.load %arg5[%c1_14, %c0_15, %c0_16] : memref<8x8x512xf32, #tpu.memory_space<vmem>>, vector<1x8x512xf32>
    %42 = vector.shape_cast %41 : vector<1x8x512xf32> to vector<8x512xf32>
    %c0_17 = arith.constant 0 : index
    %c0_18 = arith.constant 0 : index
    %43 = vector.load %arg2[%c0_17, %c0_18] : memref<128x512xf32, #tpu.memory_space<vmem>>, vector<128x512xf32>
    %cst_19 = arith.constant dense<0.000000e+00> : vector<8x512xf32>
    %44 = tpu.matmul %40, %43, %cst_19 {dimension_numbers = #tpu.dot_dimension_numbers<[1], [0], [0], [1], [0, 0, 1, 1], [], []>} : vector<8x128xf32>, vector<128x512xf32>, vector<8x512xf32> -> vector<8x512xf32>
    %45 = arith.addf %42, %44 : vector<8x512xf32>
    %46 = vector.extract_strided_slice %45 {offsets = [0, 0], sizes = [8, 384], strides = [1, 1]} : vector<8x512xf32> to vector<8x384xf32>
    %47 = arith.negf %46 : vector<8x384xf32>
    %48 = math.exp %47 : vector<8x384xf32>
    %cst_20 = arith.constant 1.000000e+00 : f32
    %49 = vector.broadcast %cst_20 : f32 to vector<8x384xf32>
    %50 = arith.addf %49, %48 : vector<8x384xf32>
    %51 = arith.divf %49, %50 : vector<8x384xf32>
    %52 = vector.extract_strided_slice %45 {offsets = [0, 384], sizes = [8, 128], strides = [1, 1]} : vector<8x512xf32> to vector<8x128xf32>
    %53 = math.tanh %52 : vector<8x128xf32>
    %54 = vector.extract_strided_slice %51 {offsets = [0, 128], sizes = [8, 128], strides = [1, 1]} : vector<8x384xf32> to vector<8x128xf32>
    %55 = arith.mulf %54, %37 : vector<8x128xf32>
    %56 = vector.extract_strided_slice %51 {offsets = [0, 0], sizes = [8, 128], strides = [1, 1]} : vector<8x384xf32> to vector<8x128xf32>
    %57 = arith.mulf %56, %53 : vector<8x128xf32>
    %58 = arith.addf %55, %57 : vector<8x128xf32>
    %59 = vector.extract_strided_slice %51 {offsets = [0, 256], sizes = [8, 128], strides = [1, 1]} : vector<8x384xf32> to vector<8x128xf32>
    %60 = math.tanh %58 : vector<8x128xf32>
    %61 = arith.mulf %59, %60 : vector<8x128xf32>
    %c2_21 = arith.constant 2 : index
    %c0_22 = arith.constant 0 : index
    %c0_23 = arith.constant 0 : index
    %62 = vector.load %arg5[%c2_21, %c0_22, %c0_23] : memref<8x8x512xf32, #tpu.memory_space<vmem>>, vector<1x8x512xf32>
    %63 = vector.shape_cast %62 : vector<1x8x512xf32> to vector<8x512xf32>
    %c0_24 = arith.constant 0 : index
    %c0_25 = arith.constant 0 : index
    %64 = vector.load %arg2[%c0_24, %c0_25] : memref<128x512xf32, #tpu.memory_space<vmem>>, vector<128x512xf32>
    %cst_26 = arith.constant dense<0.000000e+00> : vector<8x512xf32>
    %65 = tpu.matmul %61, %64, %cst_26 {dimension_numbers = #tpu.dot_dimension_numbers<[1], [0], [0], [1], [0, 0, 1, 1], [], []>} : vector<8x128xf32>, vector<128x512xf32>, vector<8x512xf32> -> vector<8x512xf32>
    %66 = arith.addf %63, %65 : vector<8x512xf32>
    %67 = vector.extract_strided_slice %66 {offsets = [0, 0], sizes = [8, 384], strides = [1, 1]} : vector<8x512xf32> to vector<8x384xf32>
    %68 = arith.negf %67 : vector<8x384xf32>
    %69 = math.exp %68 : vector<8x384xf32>
    %cst_27 = arith.constant 1.000000e+00 : f32
    %70 = vector.broadcast %cst_27 : f32 to vector<8x384xf32>
    %71 = arith.addf %70, %69 : vector<8x384xf32>
    %72 = arith.divf %70, %71 : vector<8x384xf32>
    %73 = vector.extract_strided_slice %66 {offsets = [0, 384], sizes = [8, 128], strides = [1, 1]} : vector<8x512xf32> to vector<8x128xf32>
    %74 = math.tanh %73 : vector<8x128xf32>
    %75 = vector.extract_strided_slice %72 {offsets = [0, 128], sizes = [8, 128], strides = [1, 1]} : vector<8x384xf32> to vector<8x128xf32>
    %76 = arith.mulf %75, %58 : vector<8x128xf32>
    %77 = vector.extract_strided_slice %72 {offsets = [0, 0], sizes = [8, 128], strides = [1, 1]} : vector<8x384xf32> to vector<8x128xf32>
    %78 = arith.mulf %77, %74 : vector<8x128xf32>
    %79 = arith.addf %76, %78 : vector<8x128xf32>
    %80 = vector.extract_strided_slice %72 {offsets = [0, 256], sizes = [8, 128], strides = [1, 1]} : vector<8x384xf32> to vector<8x128xf32>
    %81 = math.tanh %79 : vector<8x128xf32>
    %82 = arith.mulf %80, %81 : vector<8x128xf32>
    %c3 = arith.constant 3 : index
    %c0_28 = arith.constant 0 : index
    %c0_29 = arith.constant 0 : index
    %83 = vector.load %arg5[%c3, %c0_28, %c0_29] : memref<8x8x512xf32, #tpu.memory_space<vmem>>, vector<1x8x512xf32>
    %84 = vector.shape_cast %83 : vector<1x8x512xf32> to vector<8x512xf32>
    %c0_30 = arith.constant 0 : index
    %c0_31 = arith.constant 0 : index
    %85 = vector.load %arg2[%c0_30, %c0_31] : memref<128x512xf32, #tpu.memory_space<vmem>>, vector<128x512xf32>
    %cst_32 = arith.constant dense<0.000000e+00> : vector<8x512xf32>
    %86 = tpu.matmul %82, %85, %cst_32 {dimension_numbers = #tpu.dot_dimension_numbers<[1], [0], [0], [1], [0, 0, 1, 1], [], []>} : vector<8x128xf32>, vector<128x512xf32>, vector<8x512xf32> -> vector<8x512xf32>
    %87 = arith.addf %84, %86 : vector<8x512xf32>
    %88 = vector.extract_strided_slice %87 {offsets = [0, 0], sizes = [8, 384], strides = [1, 1]} : vector<8x512xf32> to vector<8x384xf32>
    %89 = arith.negf %88 : vector<8x384xf32>
    %90 = math.exp %89 : vector<8x384xf32>
    %cst_33 = arith.constant 1.000000e+00 : f32
    %91 = vector.broadcast %cst_33 : f32 to vector<8x384xf32>
    %92 = arith.addf %91, %90 : vector<8x384xf32>
    %93 = arith.divf %91, %92 : vector<8x384xf32>
    %94 = vector.extract_strided_slice %87 {offsets = [0, 384], sizes = [8, 128], strides = [1, 1]} : vector<8x512xf32> to vector<8x128xf32>
    %95 = math.tanh %94 : vector<8x128xf32>
    %96 = vector.extract_strided_slice %93 {offsets = [0, 128], sizes = [8, 128], strides = [1, 1]} : vector<8x384xf32> to vector<8x128xf32>
    %97 = arith.mulf %96, %79 : vector<8x128xf32>
    %98 = vector.extract_strided_slice %93 {offsets = [0, 0], sizes = [8, 128], strides = [1, 1]} : vector<8x384xf32> to vector<8x128xf32>
    %99 = arith.mulf %98, %95 : vector<8x128xf32>
    %100 = arith.addf %97, %99 : vector<8x128xf32>
    %101 = vector.extract_strided_slice %93 {offsets = [0, 256], sizes = [8, 128], strides = [1, 1]} : vector<8x384xf32> to vector<8x128xf32>
    %102 = math.tanh %100 : vector<8x128xf32>
    %103 = arith.mulf %101, %102 : vector<8x128xf32>
    %c4 = arith.constant 4 : index
    %c0_34 = arith.constant 0 : index
    %c0_35 = arith.constant 0 : index
    %104 = vector.load %arg5[%c4, %c0_34, %c0_35] : memref<8x8x512xf32, #tpu.memory_space<vmem>>, vector<1x8x512xf32>
    %105 = vector.shape_cast %104 : vector<1x8x512xf32> to vector<8x512xf32>
    %c0_36 = arith.constant 0 : index
    %c0_37 = arith.constant 0 : index
    %106 = vector.load %arg2[%c0_36, %c0_37] : memref<128x512xf32, #tpu.memory_space<vmem>>, vector<128x512xf32>
    %cst_38 = arith.constant dense<0.000000e+00> : vector<8x512xf32>
    %107 = tpu.matmul %103, %106, %cst_38 {dimension_numbers = #tpu.dot_dimension_numbers<[1], [0], [0], [1], [0, 0, 1, 1], [], []>} : vector<8x128xf32>, vector<128x512xf32>, vector<8x512xf32> -> vector<8x512xf32>
    %108 = arith.addf %105, %107 : vector<8x512xf32>
    %109 = vector.extract_strided_slice %108 {offsets = [0, 0], sizes = [8, 384], strides = [1, 1]} : vector<8x512xf32> to vector<8x384xf32>
    %110 = arith.negf %109 : vector<8x384xf32>
    %111 = math.exp %110 : vector<8x384xf32>
    %cst_39 = arith.constant 1.000000e+00 : f32
    %112 = vector.broadcast %cst_39 : f32 to vector<8x384xf32>
    %113 = arith.addf %112, %111 : vector<8x384xf32>
    %114 = arith.divf %112, %113 : vector<8x384xf32>
    %115 = vector.extract_strided_slice %108 {offsets = [0, 384], sizes = [8, 128], strides = [1, 1]} : vector<8x512xf32> to vector<8x128xf32>
    %116 = math.tanh %115 : vector<8x128xf32>
    %117 = vector.extract_strided_slice %114 {offsets = [0, 128], sizes = [8, 128], strides = [1, 1]} : vector<8x384xf32> to vector<8x128xf32>
    %118 = arith.mulf %117, %100 : vector<8x128xf32>
    %119 = vector.extract_strided_slice %114 {offsets = [0, 0], sizes = [8, 128], strides = [1, 1]} : vector<8x384xf32> to vector<8x128xf32>
    %120 = arith.mulf %119, %116 : vector<8x128xf32>
    %121 = arith.addf %118, %120 : vector<8x128xf32>
    %122 = vector.extract_strided_slice %114 {offsets = [0, 256], sizes = [8, 128], strides = [1, 1]} : vector<8x384xf32> to vector<8x128xf32>
    %123 = math.tanh %121 : vector<8x128xf32>
    %124 = arith.mulf %122, %123 : vector<8x128xf32>
    %c5 = arith.constant 5 : index
    %c0_40 = arith.constant 0 : index
    %c0_41 = arith.constant 0 : index
    %125 = vector.load %arg5[%c5, %c0_40, %c0_41] : memref<8x8x512xf32, #tpu.memory_space<vmem>>, vector<1x8x512xf32>
    %126 = vector.shape_cast %125 : vector<1x8x512xf32> to vector<8x512xf32>
    %c0_42 = arith.constant 0 : index
    %c0_43 = arith.constant 0 : index
    %127 = vector.load %arg2[%c0_42, %c0_43] : memref<128x512xf32, #tpu.memory_space<vmem>>, vector<128x512xf32>
    %cst_44 = arith.constant dense<0.000000e+00> : vector<8x512xf32>
    %128 = tpu.matmul %124, %127, %cst_44 {dimension_numbers = #tpu.dot_dimension_numbers<[1], [0], [0], [1], [0, 0, 1, 1], [], []>} : vector<8x128xf32>, vector<128x512xf32>, vector<8x512xf32> -> vector<8x512xf32>
    %129 = arith.addf %126, %128 : vector<8x512xf32>
    %130 = vector.extract_strided_slice %129 {offsets = [0, 0], sizes = [8, 384], strides = [1, 1]} : vector<8x512xf32> to vector<8x384xf32>
    %131 = arith.negf %130 : vector<8x384xf32>
    %132 = math.exp %131 : vector<8x384xf32>
    %cst_45 = arith.constant 1.000000e+00 : f32
    %133 = vector.broadcast %cst_45 : f32 to vector<8x384xf32>
    %134 = arith.addf %133, %132 : vector<8x384xf32>
    %135 = arith.divf %133, %134 : vector<8x384xf32>
    %136 = vector.extract_strided_slice %129 {offsets = [0, 384], sizes = [8, 128], strides = [1, 1]} : vector<8x512xf32> to vector<8x128xf32>
    %137 = math.tanh %136 : vector<8x128xf32>
    %138 = vector.extract_strided_slice %135 {offsets = [0, 128], sizes = [8, 128], strides = [1, 1]} : vector<8x384xf32> to vector<8x128xf32>
    %139 = arith.mulf %138, %121 : vector<8x128xf32>
    %140 = vector.extract_strided_slice %135 {offsets = [0, 0], sizes = [8, 128], strides = [1, 1]} : vector<8x384xf32> to vector<8x128xf32>
    %141 = arith.mulf %140, %137 : vector<8x128xf32>
    %142 = arith.addf %139, %141 : vector<8x128xf32>
    %143 = vector.extract_strided_slice %135 {offsets = [0, 256], sizes = [8, 128], strides = [1, 1]} : vector<8x384xf32> to vector<8x128xf32>
    %144 = math.tanh %142 : vector<8x128xf32>
    %145 = arith.mulf %143, %144 : vector<8x128xf32>
    %c6 = arith.constant 6 : index
    %c0_46 = arith.constant 0 : index
    %c0_47 = arith.constant 0 : index
    %146 = vector.load %arg5[%c6, %c0_46, %c0_47] : memref<8x8x512xf32, #tpu.memory_space<vmem>>, vector<1x8x512xf32>
    %147 = vector.shape_cast %146 : vector<1x8x512xf32> to vector<8x512xf32>
    %c0_48 = arith.constant 0 : index
    %c0_49 = arith.constant 0 : index
    %148 = vector.load %arg2[%c0_48, %c0_49] : memref<128x512xf32, #tpu.memory_space<vmem>>, vector<128x512xf32>
    %cst_50 = arith.constant dense<0.000000e+00> : vector<8x512xf32>
    %149 = tpu.matmul %145, %148, %cst_50 {dimension_numbers = #tpu.dot_dimension_numbers<[1], [0], [0], [1], [0, 0, 1, 1], [], []>} : vector<8x128xf32>, vector<128x512xf32>, vector<8x512xf32> -> vector<8x512xf32>
    %150 = arith.addf %147, %149 : vector<8x512xf32>
    %151 = vector.extract_strided_slice %150 {offsets = [0, 0], sizes = [8, 384], strides = [1, 1]} : vector<8x512xf32> to vector<8x384xf32>
    %152 = arith.negf %151 : vector<8x384xf32>
    %153 = math.exp %152 : vector<8x384xf32>
    %cst_51 = arith.constant 1.000000e+00 : f32
    %154 = vector.broadcast %cst_51 : f32 to vector<8x384xf32>
    %155 = arith.addf %154, %153 : vector<8x384xf32>
    %156 = arith.divf %154, %155 : vector<8x384xf32>
    %157 = vector.extract_strided_slice %150 {offsets = [0, 384], sizes = [8, 128], strides = [1, 1]} : vector<8x512xf32> to vector<8x128xf32>
    %158 = math.tanh %157 : vector<8x128xf32>
    %159 = vector.extract_strided_slice %156 {offsets = [0, 128], sizes = [8, 128], strides = [1, 1]} : vector<8x384xf32> to vector<8x128xf32>
    %160 = arith.mulf %159, %142 : vector<8x128xf32>
    %161 = vector.extract_strided_slice %156 {offsets = [0, 0], sizes = [8, 128], strides = [1, 1]} : vector<8x384xf32> to vector<8x128xf32>
    %162 = arith.mulf %161, %158 : vector<8x128xf32>
    %163 = arith.addf %160, %162 : vector<8x128xf32>
    %164 = vector.extract_strided_slice %156 {offsets = [0, 256], sizes = [8, 128], strides = [1, 1]} : vector<8x384xf32> to vector<8x128xf32>
    %165 = math.tanh %163 : vector<8x128xf32>
    %166 = arith.mulf %164, %165 : vector<8x128xf32>
    %c7 = arith.constant 7 : index
    %c0_52 = arith.constant 0 : index
    %c0_53 = arith.constant 0 : index
    %167 = vector.load %arg5[%c7, %c0_52, %c0_53] : memref<8x8x512xf32, #tpu.memory_space<vmem>>, vector<1x8x512xf32>
    %168 = vector.shape_cast %167 : vector<1x8x512xf32> to vector<8x512xf32>
    %c0_54 = arith.constant 0 : index
    %c0_55 = arith.constant 0 : index
    %169 = vector.load %arg2[%c0_54, %c0_55] : memref<128x512xf32, #tpu.memory_space<vmem>>, vector<128x512xf32>
    %cst_56 = arith.constant dense<0.000000e+00> : vector<8x512xf32>
    %170 = tpu.matmul %166, %169, %cst_56 {dimension_numbers = #tpu.dot_dimension_numbers<[1], [0], [0], [1], [0, 0, 1, 1], [], []>} : vector<8x128xf32>, vector<128x512xf32>, vector<8x512xf32> -> vector<8x512xf32>
    %171 = arith.addf %168, %170 : vector<8x512xf32>
    %172 = vector.extract_strided_slice %171 {offsets = [0, 0], sizes = [8, 384], strides = [1, 1]} : vector<8x512xf32> to vector<8x384xf32>
    %173 = arith.negf %172 : vector<8x384xf32>
    %174 = math.exp %173 : vector<8x384xf32>
    %cst_57 = arith.constant 1.000000e+00 : f32
    %175 = vector.broadcast %cst_57 : f32 to vector<8x384xf32>
    %176 = arith.addf %175, %174 : vector<8x384xf32>
    %177 = arith.divf %175, %176 : vector<8x384xf32>
    %178 = vector.extract_strided_slice %171 {offsets = [0, 384], sizes = [8, 128], strides = [1, 1]} : vector<8x512xf32> to vector<8x128xf32>
    %179 = math.tanh %178 : vector<8x128xf32>
    %180 = vector.extract_strided_slice %177 {offsets = [0, 128], sizes = [8, 128], strides = [1, 1]} : vector<8x384xf32> to vector<8x128xf32>
    %181 = arith.mulf %180, %163 : vector<8x128xf32>
    %182 = vector.extract_strided_slice %177 {offsets = [0, 0], sizes = [8, 128], strides = [1, 1]} : vector<8x384xf32> to vector<8x128xf32>
    %183 = arith.mulf %182, %179 : vector<8x128xf32>
    %184 = arith.addf %181, %183 : vector<8x128xf32>
    %185 = vector.extract_strided_slice %177 {offsets = [0, 256], sizes = [8, 128], strides = [1, 1]} : vector<8x384xf32> to vector<8x128xf32>
    %186 = math.tanh %184 : vector<8x128xf32>
    %187 = arith.mulf %185, %186 : vector<8x128xf32>
    %c0_58 = arith.constant 0 : index
    %c0_59 = arith.constant 0 : index
    %188 = vector.load %arg4[%c0_58, %c0_59] : memref<8x128xf32, #tpu.memory_space<vmem>>, vector<8x128xf32>
    tpu.vector_store %arg4[%c0_58, %c0_59], %187 {strides = array<i32>} : memref<8x128xf32, #tpu.memory_space<vmem>>, vector<8x128xf32>,
    return
  }
}

</mosaic_0001>

<llo_original>
// kernel: encoder_forward.1
$region0: #{encoder_forward.1}
  #allocation0 [shape = 'u32[]', space=smem, size = 0x4, offset = 0x4, fixed_abs, tag = 'smem constant byte address 0x4 - core index']
  #allocation1 [shape = 'u32[144,128]{1,0:T(1,128)}', space=vmem, size = 0x12000, scoped, tag = 'internal scratch']
  #allocation2 [shape = 'f32[8,8,512]{2,1,0:T(8,128)}', space=vmem, size = 0x20000, scoped, tag = 'scratch operand']
  %s0 = inlined_call_operand.vmem [shape: f32[8,8,3], index: 0, kind: input, shape index: {}]
  %s1 = inlined_call_operand.vmem [shape: f32[3,512], index: 1, kind: input, shape index: {}]
  %s2 = inlined_call_operand.hbm [shape: f32[128,512], index: 2, kind: input, shape index: {}]
  %s3 = inlined_call_operand.vmem [shape: f32[1,512], index: 3, kind: input, shape index: {}]
  %s4 = inlined_call_operand.vmem [shape: f32[8,128], index: 4, kind: output, shape index: {}]
  %s5 = sld [smem:[#allocation0]]
  $region30: #{encoder_forward.1} parent=0
    _
  %s7 = ssub.s32 1, %s5
  %s8 = scalar_select 0, %s7, %s5
  $region1: #{encoder_forward.1} parent=0
    #allocation3 [shape = 'u8[262144]{0}', space=vmem, size = 0x40000, scoped, tag = 'input window, operand 2, single buffered']
    #allocation4 [shape = 's32[1]{0}', space=sflag, size = 0x4, scoped, tag = 'scoped memory for encoder_forward.1']
    %9 = vsyncpa [#allocation4], 0
    // Predicated region
    $region2: #{encoder_forward.1} parent=1 // pred_check
      _
    $region3: #{encoder_forward.1} parent=1 // pred_check_branch
      %11 = sbr.rel (0) target = $region5
    $region4: #{encoder_forward.1} parent=1 // pred_region
      _
    $region5: #{encoder_forward.1} parent=1 // pred_fallthru
      _
    // Predicated region
    $region6: #{encoder_forward.1} parent=1 // pred_check
      _
    $region7: #{encoder_forward.1} parent=1 // pred_check_branch
      %13 = sbr.rel (0) target = $region9
    $region8: #{encoder_forward.1} parent=1 // pred_region
      _
    $region9: #{encoder_forward.1} parent=1 // pred_fallthru
      _
    // Predicated region
    $region10: #{encoder_forward.1} parent=1 // pred_check
      _
    $region11: #{encoder_forward.1} parent=1 // pred_check_branch
      %15 = sbr.rel (0) target = $region13
    $region12: #{encoder_forward.1} parent=1 // pred_region
      %s17 = ssub.s32 8192, 8192
      %18 = vsyncadd [#allocation4], %s17
      %s19 = sshll.u32 [#allocation3], 4
      %s20 = int_to_ptr.vmem [resolvable:$true] %s19
      %25 = dma.hbm_to_vmem [thread:$0]  %s2, 8192, %s20, [#allocation4], 512, 512, 32
    $region13: #{encoder_forward.1} parent=1 // pred_fallthru
      _
    // Predicated region
    $region14: #{encoder_forward.1} parent=1 // pred_check
      _
    $region15: #{encoder_forward.1} parent=1 // pred_check_branch
      %27 = sbr.rel (0) target = $region17
    $region16: #{encoder_forward.1} parent=1 // pred_region
      _
    $region17: #{encoder_forward.1} parent=1 // pred_fallthru
      _
    // Predicated region
    $region18: #{encoder_forward.1} parent=1 // pred_check
      _
    $region19: #{encoder_forward.1} parent=1 // pred_check_branch
      %29 = sbr.rel (0) target = $region21
    $region20: #{encoder_forward.1} parent=1 // pred_region
      %30 = dma.done [#allocation4], 8192
    $region21: #{encoder_forward.1} parent=1 // pred_fallthru
      _
    %v31 = vld [vmem:[%s0] sm:$0xff]
    %v32 = vld [vmem:[%s0 + $0x8] sm:$0xff]
    %v33 = vld [vmem:[%s0 + $0x10] sm:$0xff]
    %v34 = vld [vmem:[%s0 + $0x18] sm:$0xff]
    %v35 = vld [vmem:[%s0 + $0x20] sm:$0xff]
    %v36 = vld [vmem:[%s0 + $0x28] sm:$0xff]
    %v37 = vld [vmem:[%s0 + $0x30] sm:$0xff]
    %v38 = vld [vmem:[%s0 + $0x38] sm:$0xff]
    %v39 = vld [vmem:[%s3] sm:$0xf]
    %v40 = vld [vmem:[%s1] ss:$4 sm:$0xf]
    %42 = vset.pattern.permute.xlu0 0
    %43 = vperm.xlu0 %42, %v31
    %v44 = vpop.permute.xlu0 %43
    %47 = vset.pattern.permute.xlu0 0
    %48 = vperm.xlu0 %47, %v32
    %v49 = vpop.permute.xlu0 %48
    %52 = vset.pattern.permute.xlu0 0
    %53 = vperm.xlu0 %52, %v33
    %v54 = vpop.permute.xlu0 %53
    %57 = vset.pattern.permute.xlu0 0
    %58 = vperm.xlu0 %57, %v34
    %v59 = vpop.permute.xlu0 %58
    %62 = vset.pattern.permute.xlu0 0
    %63 = vperm.xlu0 %62, %v35
    %v64 = vpop.permute.xlu0 %63
    %67 = vset.pattern.permute.xlu0 0
    %68 = vperm.xlu0 %67, %v36
    %v69 = vpop.permute.xlu0 %68
    %72 = vset.pattern.permute.xlu0 0
    %73 = vperm.xlu0 %72, %v37
    %v74 = vpop.permute.xlu0 %73
    %77 = vset.pattern.permute.xlu0 0
    %78 = vperm.xlu0 %77, %v38
    %v79 = vpop.permute.xlu0 %78
    %v82 = vlaneseq
    %v83 = vshrl.u32 %v82, 7
    %v84 = vsub.s32 0, %v83
    %v85 = vrot.slane %v40, %v84
    %v86 = vlaneseq
    %v87 = vshrl.u32 %v86, 7
    %v88 = vsub.s32 1, %v87
    %v89 = vrot.slane %v40, %v88
    %v90 = vlaneseq
    %v91 = vshrl.u32 %v90, 7
    %v92 = vsub.s32 2, %v91
    %v93 = vrot.slane %v40, %v92
    %v94 = vlaneseq
    %v95 = vshrl.u32 %v94, 7
    %v96 = vsub.s32 3, %v95
    %v97 = vrot.slane %v40, %v96
    %v102 = vmul.f32 %v44, %v85
    %v103 = vmul.f32 %v44, %v89
    %v104 = vmul.f32 %v44, %v93
    %v105 = vmul.f32 %v44, %v97
    %v106 = vmul.f32 %v49, %v85
    %v107 = vmul.f32 %v49, %v89
    %v108 = vmul.f32 %v49, %v93
    %v109 = vmul.f32 %v49, %v97
    %v110 = vmul.f32 %v54, %v85
    %v111 = vmul.f32 %v54, %v89
    %v112 = vmul.f32 %v54, %v93
    %v113 = vmul.f32 %v54, %v97
    %v114 = vmul.f32 %v59, %v85
    %v115 = vmul.f32 %v59, %v89
    %v116 = vmul.f32 %v59, %v93
    %v117 = vmul.f32 %v59, %v97
    %v118 = vmul.f32 %v64, %v85
    %v119 = vmul.f32 %v64, %v89
    %v120 = vmul.f32 %v64, %v93
    %v121 = vmul.f32 %v64, %v97
    %v122 = vmul.f32 %v69, %v85
    %v123 = vmul.f32 %v69, %v89
    %v124 = vmul.f32 %v69, %v93
    %v125 = vmul.f32 %v69, %v97
    %v126 = vmul.f32 %v74, %v85
    %v127 = vmul.f32 %v74, %v89
    %v128 = vmul.f32 %v74, %v93
    %v129 = vmul.f32 %v74, %v97
    %v130 = vmul.f32 %v79, %v85
    %v131 = vmul.f32 %v79, %v89
    %v132 = vmul.f32 %v79, %v93
    %v133 = vmul.f32 %v79, %v97
    %v135 = vlaneseq
    %v136 = vshrl.u32 %v135, 7
    %v137 = vsub.s32 0, %v136
    %v138 = vrot.slane %v39, %v137
    %v139 = vlaneseq
    %v140 = vshrl.u32 %v139, 7
    %v141 = vsub.s32 1, %v140
    %v142 = vrot.slane %v39, %v141
    %v143 = vlaneseq
    %v144 = vshrl.u32 %v143, 7
    %v145 = vsub.s32 2, %v144
    %v146 = vrot.slane %v39, %v145
    %v147 = vlaneseq
    %v148 = vshrl.u32 %v147, 7
    %v149 = vsub.s32 3, %v148
    %v150 = vrot.slane %v39, %v149
    %v155 = vadd.f32 %v138, %v102
    %v156 = vadd.f32 %v142, %v103
    %v157 = vadd.f32 %v146, %v104
    %v158 = vadd.f32 %v150, %v105
    %v159 = vadd.f32 %v138, %v106
    %v160 = vadd.f32 %v142, %v107
    %v161 = vadd.f32 %v146, %v108
    %v162 = vadd.f32 %v150, %v109
    %v163 = vadd.f32 %v138, %v110
    %v164 = vadd.f32 %v142, %v111
    %v165 = vadd.f32 %v146, %v112
    %v166 = vadd.f32 %v150, %v113
    %v167 = vadd.f32 %v138, %v114
    %v168 = vadd.f32 %v142, %v115
    %v169 = vadd.f32 %v146, %v116
    %v170 = vadd.f32 %v150, %v117
    %v171 = vadd.f32 %v138, %v118
    %v172 = vadd.f32 %v142, %v119
    %v173 = vadd.f32 %v146, %v120
    %v174 = vadd.f32 %v150, %v121
    %v175 = vadd.f32 %v138, %v122
    %v176 = vadd.f32 %v142, %v123
    %v177 = vadd.f32 %v146, %v124
    %v178 = vadd.f32 %v150, %v125
    %v179 = vadd.f32 %v138, %v126
    %v180 = vadd.f32 %v142, %v127
    %v181 = vadd.f32 %v146, %v128
    %v182 = vadd.f32 %v150, %v129
    %v183 = vadd.f32 %v138, %v130
    %v184 = vadd.f32 %v142, %v131
    %v185 = vadd.f32 %v146, %v132
    %v186 = vadd.f32 %v150, %v133
    %s187 = scalar_lea.vmem %s1, 1
    %v188 = vld [vmem:[%s187] ss:$4 sm:$0xf]
    %189 = vset.pattern.permute.xlu0 1
    %190 = vperm.xlu0 %189, %v31
    %v191 = vpop.permute.xlu0 %190
    %193 = vset.pattern.permute.xlu0 1
    %194 = vperm.xlu0 %193, %v32
    %v195 = vpop.permute.xlu0 %194
    %197 = vset.pattern.permute.xlu0 1
    %198 = vperm.xlu0 %197, %v33
    %v199 = vpop.permute.xlu0 %198
    %201 = vset.pattern.permute.xlu0 1
    %202 = vperm.xlu0 %201, %v34
    %v203 = vpop.permute.xlu0 %202
    %205 = vset.pattern.permute.xlu0 1
    %206 = vperm.xlu0 %205, %v35
    %v207 = vpop.permute.xlu0 %206
    %209 = vset.pattern.permute.xlu0 1
    %210 = vperm.xlu0 %209, %v36
    %v211 = vpop.permute.xlu0 %210
    %213 = vset.pattern.permute.xlu0 1
    %214 = vperm.xlu0 %213, %v37
    %v215 = vpop.permute.xlu0 %214
    %217 = vset.pattern.permute.xlu0 1
    %218 = vperm.xlu0 %217, %v38
    %v219 = vpop.permute.xlu0 %218
    %v222 = vlaneseq
    %v223 = vshrl.u32 %v222, 7
    %v224 = vsub.s32 0, %v223
    %v225 = vrot.slane %v188, %v224
    %v226 = vlaneseq
    %v227 = vshrl.u32 %v226, 7
    %v228 = vsub.s32 1, %v227
    %v229 = vrot.slane %v188, %v228
    %v230 = vlaneseq
    %v231 = vshrl.u32 %v230, 7
    %v232 = vsub.s32 2, %v231
    %v233 = vrot.slane %v188, %v232
    %v234 = vlaneseq
    %v235 = vshrl.u32 %v234, 7
    %v236 = vsub.s32 3, %v235
    %v237 = vrot.slane %v188, %v236
    %v242 = vmul.f32 %v191, %v225
    %v243 = vmul.f32 %v191, %v229
    %v244 = vmul.f32 %v191, %v233
    %v245 = vmul.f32 %v191, %v237
    %v246 = vmul.f32 %v195, %v225
    %v247 = vmul.f32 %v195, %v229
    %v248 = vmul.f32 %v195, %v233
    %v249 = vmul.f32 %v195, %v237
    %v250 = vmul.f32 %v199, %v225
    %v251 = vmul.f32 %v199, %v229
    %v252 = vmul.f32 %v199, %v233
    %v253 = vmul.f32 %v199, %v237
    %v254 = vmul.f32 %v203, %v225
    %v255 = vmul.f32 %v203, %v229
    %v256 = vmul.f32 %v203, %v233
    %v257 = vmul.f32 %v203, %v237
    %v258 = vmul.f32 %v207, %v225
    %v259 = vmul.f32 %v207, %v229
    %v260 = vmul.f32 %v207, %v233
    %v261 = vmul.f32 %v207, %v237
    %v262 = vmul.f32 %v211, %v225
    %v263 = vmul.f32 %v211, %v229
    %v264 = vmul.f32 %v211, %v233
    %v265 = vmul.f32 %v211, %v237
    %v266 = vmul.f32 %v215, %v225
    %v267 = vmul.f32 %v215, %v229
    %v268 = vmul.f32 %v215, %v233
    %v269 = vmul.f32 %v215, %v237
    %v270 = vmul.f32 %v219, %v225
    %v271 = vmul.f32 %v219, %v229
    %v272 = vmul.f32 %v219, %v233
    %v273 = vmul.f32 %v219, %v237
    %v274 = vadd.f32 %v155, %v242
    %v275 = vadd.f32 %v156, %v243
    %v276 = vadd.f32 %v157, %v244
    %v277 = vadd.f32 %v158, %v245
    %v278 = vadd.f32 %v159, %v246
    %v279 = vadd.f32 %v160, %v247
    %v280 = vadd.f32 %v161, %v248
    %v281 = vadd.f32 %v162, %v249
    %v282 = vadd.f32 %v163, %v250
    %v283 = vadd.f32 %v164, %v251
    %v284 = vadd.f32 %v165, %v252
    %v285 = vadd.f32 %v166, %v253
    %v286 = vadd.f32 %v167, %v254
    %v287 = vadd.f32 %v168, %v255
    %v288 = vadd.f32 %v169, %v256
    %v289 = vadd.f32 %v170, %v257
    %v290 = vadd.f32 %v171, %v258
    %v291 = vadd.f32 %v172, %v259
    %v292 = vadd.f32 %v173, %v260
    %v293 = vadd.f32 %v174, %v261
    %v294 = vadd.f32 %v175, %v262
    %v295 = vadd.f32 %v176, %v263
    %v296 = vadd.f32 %v177, %v264
    %v297 = vadd.f32 %v178, %v265
    %v298 = vadd.f32 %v179, %v266
    %v299 = vadd.f32 %v180, %v267
    %v300 = vadd.f32 %v181, %v268
    %v301 = vadd.f32 %v182, %v269
    %v302 = vadd.f32 %v183, %v270
    %v303 = vadd.f32 %v184, %v271
    %v304 = vadd.f32 %v185, %v272
    %v305 = vadd.f32 %v186, %v273
    %s306 = scalar_lea.vmem %s1, 2
    %v307 = vld [vmem:[%s306] ss:$4 sm:$0xf]
    %308 = vset.pattern.permute.xlu0 2
    %309 = vperm.xlu0 %308, %v31
    %v310 = vpop.permute.xlu0 %309
    %312 = vset.pattern.permute.xlu0 2
    %313 = vperm.xlu0 %312, %v32
    %v314 = vpop.permute.xlu0 %313
    %316 = vset.pattern.permute.xlu0 2
    %317 = vperm.xlu0 %316, %v33
    %v318 = vpop.permute.xlu0 %317
    %320 = vset.pattern.permute.xlu0 2
    %321 = vperm.xlu0 %320, %v34
    %v322 = vpop.permute.xlu0 %321
    %324 = vset.pattern.permute.xlu0 2
    %325 = vperm.xlu0 %324, %v35
    %v326 = vpop.permute.xlu0 %325
    %328 = vset.pattern.permute.xlu0 2
    %329 = vperm.xlu0 %328, %v36
    %v330 = vpop.permute.xlu0 %329
    %332 = vset.pattern.permute.xlu0 2
    %333 = vperm.xlu0 %332, %v37
    %v334 = vpop.permute.xlu0 %333
    %336 = vset.pattern.permute.xlu0 2
    %337 = vperm.xlu0 %336, %v38
    %v338 = vpop.permute.xlu0 %337
    %v341 = vlaneseq
    %v342 = vshrl.u32 %v341, 7
    %v343 = vsub.s32 0, %v342
    %v344 = vrot.slane %v307, %v343
    %v345 = vlaneseq
    %v346 = vshrl.u32 %v345, 7
    %v347 = vsub.s32 1, %v346
    %v348 = vrot.slane %v307, %v347
    %v349 = vlaneseq
    %v350 = vshrl.u32 %v349, 7
    %v351 = vsub.s32 2, %v350
    %v352 = vrot.slane %v307, %v351
    %v353 = vlaneseq
    %v354 = vshrl.u32 %v353, 7
    %v355 = vsub.s32 3, %v354
    %v356 = vrot.slane %v307, %v355
    %v361 = vmul.f32 %v310, %v344
    %v362 = vmul.f32 %v310, %v348
    %v363 = vmul.f32 %v310, %v352
    %v364 = vmul.f32 %v310, %v356
    %v365 = vmul.f32 %v314, %v344
    %v366 = vmul.f32 %v314, %v348
    %v367 = vmul.f32 %v314, %v352
    %v368 = vmul.f32 %v314, %v356
    %v369 = vmul.f32 %v318, %v344
    %v370 = vmul.f32 %v318, %v348
    %v371 = vmul.f32 %v318, %v352
    %v372 = vmul.f32 %v318, %v356
    %v373 = vmul.f32 %v322, %v344
    %v374 = vmul.f32 %v322, %v348
    %v375 = vmul.f32 %v322, %v352
    %v376 = vmul.f32 %v322, %v356
    %v377 = vmul.f32 %v326, %v344
    %v378 = vmul.f32 %v326, %v348
    %v379 = vmul.f32 %v326, %v352
    %v380 = vmul.f32 %v326, %v356
    %v381 = vmul.f32 %v330, %v344
    %v382 = vmul.f32 %v330, %v348
    %v383 = vmul.f32 %v330, %v352
    %v384 = vmul.f32 %v330, %v356
    %v385 = vmul.f32 %v334, %v344
    %v386 = vmul.f32 %v334, %v348
    %v387 = vmul.f32 %v334, %v352
    %v388 = vmul.f32 %v334, %v356
    %v389 = vmul.f32 %v338, %v344
    %v390 = vmul.f32 %v338, %v348
    %v391 = vmul.f32 %v338, %v352
    %v392 = vmul.f32 %v338, %v356
    %v393 = vadd.f32 %v274, %v361
    %v394 = vadd.f32 %v275, %v362
    %v395 = vadd.f32 %v276, %v363
    %v396 = vadd.f32 %v277, %v364
    %v397 = vadd.f32 %v278, %v365
    %v398 = vadd.f32 %v279, %v366
    %v399 = vadd.f32 %v280, %v367
    %v400 = vadd.f32 %v281, %v368
    %v401 = vadd.f32 %v282, %v369
    %v402 = vadd.f32 %v283, %v370
    %v403 = vadd.f32 %v284, %v371
    %v404 = vadd.f32 %v285, %v372
    %v405 = vadd.f32 %v286, %v373
    %v406 = vadd.f32 %v287, %v374
    %v407 = vadd.f32 %v288, %v375
    %v408 = vadd.f32 %v289, %v376
    %v409 = vadd.f32 %v290, %v377
    %v410 = vadd.f32 %v291, %v378
    %v411 = vadd.f32 %v292, %v379
    %v412 = vadd.f32 %v293, %v380
    %v413 = vadd.f32 %v294, %v381
    %v414 = vadd.f32 %v295, %v382
    %v415 = vadd.f32 %v296, %v383
    %v416 = vadd.f32 %v297, %v384
    %v417 = vadd.f32 %v298, %v385
    %v418 = vadd.f32 %v299, %v386
    %v419 = vadd.f32 %v300, %v387
    %v420 = vadd.f32 %v301, %v388
    %v421 = vadd.f32 %v302, %v389
    %v422 = vadd.f32 %v303, %v390
    %v423 = vadd.f32 %v304, %v391
    %v424 = vadd.f32 %v305, %v392
    %425 = vst [vmem:[#allocation2] sm:$0xff] %v393
    %426 = vst [vmem:[#allocation2 + $0x8] sm:$0xff] %v394
    %427 = vst [vmem:[#allocation2 + $0x10] sm:$0xff] %v395
    %428 = vst [vmem:[#allocation2 + $0x18] sm:$0xff] %v396
    %429 = vst [vmem:[#allocation2 + $0x20] sm:$0xff] %v397
    %430 = vst [vmem:[#allocation2 + $0x28] sm:$0xff] %v398
    %431 = vst [vmem:[#allocation2 + $0x30] sm:$0xff] %v399
    %432 = vst [vmem:[#allocation2 + $0x38] sm:$0xff] %v400
    %433 = vst [vmem:[#allocation2 + $0x40] sm:$0xff] %v401
    %434 = vst [vmem:[#allocation2 + $0x48] sm:$0xff] %v402
    %435 = vst [vmem:[#allocation2 + $0x50] sm:$0xff] %v403
    %436 = vst [vmem:[#allocation2 + $0x58] sm:$0xff] %v404
    %437 = vst [vmem:[#allocation2 + $0x60] sm:$0xff] %v405
    %438 = vst [vmem:[#allocation2 + $0x68] sm:$0xff] %v406
    %439 = vst [vmem:[#allocation2 + $0x70] sm:$0xff] %v407
    %440 = vst [vmem:[#allocation2 + $0x78] sm:$0xff] %v408
    %441 = vst [vmem:[#allocation2 + $0x80] sm:$0xff] %v409
    %442 = vst [vmem:[#allocation2 + $0x88] sm:$0xff] %v410
    %443 = vst [vmem:[#allocation2 + $0x90] sm:$0xff] %v411
    %444 = vst [vmem:[#allocation2 + $0x98] sm:$0xff] %v412
    %445 = vst [vmem:[#allocation2 + $0xa0] sm:$0xff] %v413
    %446 = vst [vmem:[#allocation2 + $0xa8] sm:$0xff] %v414
    %447 = vst [vmem:[#allocation2 + $0xb0] sm:$0xff] %v415
    %448 = vst [vmem:[#allocation2 + $0xb8] sm:$0xff] %v416
    %449 = vst [vmem:[#allocation2 + $0xc0] sm:$0xff] %v417
    %450 = vst [vmem:[#allocation2 + $0xc8] sm:$0xff] %v418
    %451 = vst [vmem:[#allocation2 + $0xd0] sm:$0xff] %v419
    %452 = vst [vmem:[#allocation2 + $0xd8] sm:$0xff] %v420
    %453 = vst [vmem:[#allocation2 + $0xe0] sm:$0xff] %v421
    %454 = vst [vmem:[#allocation2 + $0xe8] sm:$0xff] %v422
    %455 = vst [vmem:[#allocation2 + $0xf0] sm:$0xff] %v423
    %456 = vst [vmem:[#allocation2 + $0xf8] sm:$0xff] %v424
    %v457 = vld [vmem:[#allocation2] sm:$0xff]
    %v458 = vld [vmem:[#allocation2 + $0x10] sm:$0xff]
    %v459 = vld [vmem:[#allocation2 + $0x18] sm:$0xff]
    %v460 = vxor.u32 %v457, 2147483648
    %v461 = vxor.u32 %v458, 2147483648
    %v462 = vmul.f32 %v460, 1.442695
    %v463 = vpow.pop %v462
    %v464 = vmul.f32 %v461, 1.442695
    %v465 = vpow.pop %v464
    %v466 = vadd.f32 %v463, 1.0
    %v467 = vadd.f32 %v465, 1.0
    %v468 = vrcp.pop %v466
    %v469 = vmul.f32 1.0, %v468
    %v470 = vrcp.pop %v467
    %v471 = vmul.f32 1.0, %v470
    %v472 = vtanh.pop %v459
    %v473 = vmul.f32 %v469, %v472
    %v474 = vtanh.pop %v473
    %v475 = vmul.f32 %v471, %v474
    %s476 = scalar_lea.vmem [#allocation2], 32
    %v477 = vld [vmem:[%s476] sm:$0xff]
    %v478 = vld [vmem:[%s476 + $0x8] sm:$0xff]
    %v479 = vld [vmem:[%s476 + $0x10] sm:$0xff]
    %v480 = vld [vmem:[%s476 + $0x18] sm:$0xff]
    %v481 = vld [vmem:[#allocation3] sm:$0xff]
    %v482 = vld [vmem:[#allocation3 + $0x8] sm:$0xff]
    %v483 = vld [vmem:[#allocation3 + $0x10] sm:$0xff]
    %v484 = vld [vmem:[#allocation3 + $0x18] sm:$0xff]
    %v485 = vld [vmem:[#allocation3 + $0x20] sm:$0xff]
    %v486 = vld [vmem:[#allocation3 + $0x28] sm:$0xff]
    %v487 = vld [vmem:[#allocation3 + $0x30] sm:$0xff]
    %v488 = vld [vmem:[#allocation3 + $0x38] sm:$0xff]
    %v489 = vld [vmem:[#allocation3 + $0x40] sm:$0xff]
    %v490 = vld [vmem:[#allocation3 + $0x48] sm:$0xff]
    %v491 = vld [vmem:[#allocation3 + $0x50] sm:$0xff]
    %v492 = vld [vmem:[#allocation3 + $0x58] sm:$0xff]
    %v493 = vld [vmem:[#allocation3 + $0x60] sm:$0xff]
    %v494 = vld [vmem:[#allocation3 + $0x68] sm:$0xff]
    %v495 = vld [vmem:[#allocation3 + $0x70] sm:$0xff]
    %v496 = vld [vmem:[#allocation3 + $0x78] sm:$0xff]
    %v497 = vld [vmem:[#allocation3 + $0x80] sm:$0xff]
    %v498 = vld [vmem:[#allocation3 + $0x88] sm:$0xff]
    %v499 = vld [vmem:[#allocation3 + $0x90] sm:$0xff]
    %v500 = vld [vmem:[#allocation3 + $0x98] sm:$0xff]
    %v501 = vld [vmem:[#allocation3 + $0xa0] sm:$0xff]
    %v502 = vld [vmem:[#allocation3 + $0xa8] sm:$0xff]
    %v503 = vld [vmem:[#allocation3 + $0xb0] sm:$0xff]
    %v504 = vld [vmem:[#allocation3 + $0xb8] sm:$0xff]
    %v505 = vld [vmem:[#allocation3 + $0xc0] sm:$0xff]
    %v506 = vld [vmem:[#allocation3 + $0xc8] sm:$0xff]
    %v507 = vld [vmem:[#allocation3 + $0xd0] sm:$0xff]
    %v508 = vld [vmem:[#allocation3 + $0xd8] sm:$0xff]
    %v509 = vld [vmem:[#allocation3 + $0xe0] sm:$0xff]
    %v510 = vld [vmem:[#allocation3 + $0xe8] sm:$0xff]
    %v511 = vld [vmem:[#allocation3 + $0xf0] sm:$0xff]
    %v512 = vld [vmem:[#allocation3 + $0xf8] sm:$0xff]
    %v513 = vld [vmem:[#allocation3 + $0x100] sm:$0xff]
    %v514 = vld [vmem:[#allocation3 + $0x108] sm:$0xff]
    %v515 = vld [vmem:[#allocation3 + $0x110] sm:$0xff]
    %v516 = vld [vmem:[#allocation3 + $0x118] sm:$0xff]
    %v517 = vld [vmem:[#allocation3 + $0x120] sm:$0xff]
    %v518 = vld [vmem:[#allocation3 + $0x128] sm:$0xff]
    %v519 = vld [vmem:[#allocation3 + $0x130] sm:$0xff]
    %v520 = vld [vmem:[#allocation3 + $0x138] sm:$0xff]
    %v521 = vld [vmem:[#allocation3 + $0x140] sm:$0xff]
    %v522 = vld [vmem:[#allocation3 + $0x148] sm:$0xff]
    %v523 = vld [vmem:[#allocation3 + $0x150] sm:$0xff]
    %v524 = vld [vmem:[#allocation3 + $0x158] sm:$0xff]
    %v525 = vld [vmem:[#allocation3 + $0x160] sm:$0xff]
    %v526 = vld [vmem:[#allocation3 + $0x168] sm:$0xff]
    %v527 = vld [vmem:[#allocation3 + $0x170] sm:$0xff]
    %v528 = vld [vmem:[#allocation3 + $0x178] sm:$0xff]
    %v529 = vld [vmem:[#allocation3 + $0x180] sm:$0xff]
    %v530 = vld [vmem:[#allocation3 + $0x188] sm:$0xff]
    %v531 = vld [vmem:[#allocation3 + $0x190] sm:$0xff]
    %v532 = vld [vmem:[#allocation3 + $0x198] sm:$0xff]
    %v533 = vld [vmem:[#allocation3 + $0x1a0] sm:$0xff]
    %v534 = vld [vmem:[#allocation3 + $0x1a8] sm:$0xff]
    %v535 = vld [vmem:[#allocation3 + $0x1b0] sm:$0xff]
    %v536 = vld [vmem:[#allocation3 + $0x1b8] sm:$0xff]
    %v537 = vld [vmem:[#allocation3 + $0x1c0] sm:$0xff]
    %v538 = vld [vmem:[#allocation3 + $0x1c8] sm:$0xff]
    %v539 = vld [vmem:[#allocation3 + $0x1d0] sm:$0xff]
    %v540 = vld [vmem:[#allocation3 + $0x1d8] sm:$0xff]
    %v541 = vld [vmem:[#allocation3 + $0x1e0] sm:$0xff]
    %v542 = vld [vmem:[#allocation3 + $0x1e8] sm:$0xff]
    %v543 = vld [vmem:[#allocation3 + $0x1f0] sm:$0xff]
    %v544 = vld [vmem:[#allocation3 + $0x1f8] sm:$0xff]
    %545 = vmatprep.subr.mxu0 %v482
    %546 = vmatpush1.msra.mxu0 %v481
    %547 = vmatprep.subr.mxu0 %v486
    %548 = vmatpush1.msra.mxu0 %v485
    %549 = vmatprep.subr.mxu0 %v490
    %550 = vmatpush1.msra.mxu0 %v489
    %551 = vmatprep.subr.mxu0 %v494
    %552 = vmatpush1.msra.mxu0 %v493
    %553 = vmatprep.subr.mxu0 %v498
    %554 = vmatpush1.msra.mxu0 %v497
    %555 = vmatprep.subr.mxu0 %v502
    %556 = vmatpush1.msra.mxu0 %v501
    %557 = vmatprep.subr.mxu0 %v506
    %558 = vmatpush1.msra.mxu0 %v505
    %559 = vmatprep.subr.mxu0 %v510
    %560 = vmatpush1.msra.mxu0 %v509
    %561 = vmatprep.subr.mxu0 %v514
    %562 = vmatpush1.msra.mxu0 %v513
    %563 = vmatprep.subr.mxu0 %v518
    %564 = vmatpush1.msra.mxu0 %v517
    %565 = vmatprep.subr.mxu0 %v522
    %566 = vmatpush1.msra.mxu0 %v521
    %567 = vmatprep.subr.mxu0 %v526
    %568 = vmatpush1.msra.mxu0 %v525
    %569 = vmatprep.subr.mxu0 %v530
    %570 = vmatpush1.msra.mxu0 %v529
    %571 = vmatprep.subr.mxu0 %v534
    %572 = vmatpush1.msra.mxu0 %v533
    %573 = vmatprep.subr.mxu0 %v538
    %574 = vmatpush1.msra.mxu0 %v537
    %575 = vmatprep.subr.mxu0 %v542
    %576 = vmatpush1.msra.mxu0 %v541
    %577 = vmatprep.subr.mxu0 0.0
    %578 = vmatpush1.msra.mxu0 0.0
    %579 = vmatprep.subr.mxu0 0.0
    %580 = vmatpush1.msra.mxu0 0.0
    %581 = vmatprep.subr.mxu0 0.0
    %582 = vmatpush1.msra.mxu0 0.0
    %583 = vmatprep.subr.mxu0 0.0
    %584 = vmatpush1.msra.mxu0 0.0
    %585 = vmatprep.subr.mxu0 0.0
    %586 = vmatpush1.msra.mxu0 0.0
    %587 = vmatprep.subr.mxu0 0.0
    %588 = vmatpush1.msra.mxu0 0.0
    %589 = vmatprep.subr.mxu0 0.0
    %590 = vmatpush1.msra.mxu0 0.0
    %591 = vmatprep.subr.mxu0 0.0
    %592 = vmatpush1.msra.mxu0 0.0
    %593 = vmatprep.subr.mxu0 0.0
    %594 = vmatpush1.msra.mxu0 0.0
    %595 = vmatprep.subr.mxu0 0.0
    %596 = vmatpush1.msra.mxu0 0.0
    %597 = vmatprep.subr.mxu0 0.0
    %598 = vmatpush1.msra.mxu0 0.0
    %599 = vmatprep.subr.mxu0 0.0
    %600 = vmatpush1.msra.mxu0 0.0
    %601 = vmatprep.subr.mxu0 0.0
    %602 = vmatpush1.msra.mxu0 0.0
    %603 = vmatprep.subr.mxu0 0.0
    %604 = vmatpush1.msra.mxu0 0.0
    %605 = vmatprep.subr.mxu0 0.0
    %606 = vmatpush1.msra.mxu0 0.0
    %607 = vmatprep.subr.mxu0 0.0
    %608 = vmatpush1.msra.mxu0 0.0
    %609 = vmatprep.mubr.f32.mxu0 0.0
    %610 = vmatmul.mubr.f32.gmra.mrb[0].mxu0 %v475
    %v611 = vpop.f32.mrb[0].mxu0
    %v612 = vadd.f32 0.0, %v611
    %v613 = vpop.f32.mrb[0].mxu0
    %v614 = vadd.f32 0.0, %v613
    %615 = vdwg.mxu0
    %616 = vmatprep.subr.mxu0 %v484
    %617 = vmatpush1.msra.mxu0 %v483
    %618 = vmatprep.subr.mxu0 %v488
    %619 = vmatpush1.msra.mxu0 %v487
    %620 = vmatprep.subr.mxu0 %v492
    %621 = vmatpush1.msra.mxu0 %v491
    %622 = vmatprep.subr.mxu0 %v496
    %623 = vmatpush1.msra.mxu0 %v495
    %624 = vmatprep.subr.mxu0 %v500
    %625 = vmatpush1.msra.mxu0 %v499
    %626 = vmatprep.subr.mxu0 %v504
    %627 = vmatpush1.msra.mxu0 %v503
    %628 = vmatprep.subr.mxu0 %v508
    %629 = vmatpush1.msra.mxu0 %v507
    %630 = vmatprep.subr.mxu0 %v512
    %631 = vmatpush1.msra.mxu0 %v511
    %632 = vmatprep.subr.mxu0 %v516
    %633 = vmatpush1.msra.mxu0 %v515
    %634 = vmatprep.subr.mxu0 %v520
    %635 = vmatpush1.msra.mxu0 %v519
    %636 = vmatprep.subr.mxu0 %v524
    %637 = vmatpush1.msra.mxu0 %v523
    %638 = vmatprep.subr.mxu0 %v528
    %639 = vmatpush1.msra.mxu0 %v527
    %640 = vmatprep.subr.mxu0 %v532
    %641 = vmatpush1.msra.mxu0 %v531
    %642 = vmatprep.subr.mxu0 %v536
    %643 = vmatpush1.msra.mxu0 %v535
    %644 = vmatprep.subr.mxu0 %v540
    %645 = vmatpush1.msra.mxu0 %v539
    %646 = vmatprep.subr.mxu0 %v544
    %647 = vmatpush1.msra.mxu0 %v543
    %648 = vmatprep.subr.mxu0 0.0
    %649 = vmatpush1.msra.mxu0 0.0
    %650 = vmatprep.subr.mxu0 0.0
    %651 = vmatpush1.msra.mxu0 0.0
    %652 = vmatprep.subr.mxu0 0.0
    %653 = vmatpush1.msra.mxu0 0.0
    %654 = vmatprep.subr.mxu0 0.0
    %655 = vmatpush1.msra.mxu0 0.0
    %656 = vmatprep.subr.mxu0 0.0
    %657 = vmatpush1.msra.mxu0 0.0
    %658 = vmatprep.subr.mxu0 0.0
    %659 = vmatpush1.msra.mxu0 0.0
    %660 = vmatprep.subr.mxu0 0.0
    %661 = vmatpush1.msra.mxu0 0.0
    %662 = vmatprep.subr.mxu0 0.0
    %663 = vmatpush1.msra.mxu0 0.0
    %664 = vmatprep.subr.mxu0 0.0
    %665 = vmatpush1.msra.mxu0 0.0
    %666 = vmatprep.subr.mxu0 0.0
    %667 = vmatpush1.msra.mxu0 0.0
    %668 = vmatprep.subr.mxu0 0.0
    %669 = vmatpush1.msra.mxu0 0.0
    %670 = vmatprep.subr.mxu0 0.0
    %671 = vmatpush1.msra.mxu0 0.0
    %672 = vmatprep.subr.mxu0 0.0
    %673 = vmatpush1.msra.mxu0 0.0
    %674 = vmatprep.subr.mxu0 0.0
    %675 = vmatpush1.msra.mxu0 0.0
    %676 = vmatprep.subr.mxu0 0.0
    %677 = vmatpush1.msra.mxu0 0.0
    %678 = vmatprep.subr.mxu0 0.0
    %679 = vmatpush1.msra.mxu0 0.0
    %680 = vmatprep.mubr.f32.mxu0 0.0
    %681 = vmatmul.mubr.f32.gmra.mrb[0].mxu0 %v475
    %v682 = vpop.f32.mrb[0].mxu0
    %v683 = vadd.f32 0.0, %v682
    %v684 = vpop.f32.mrb[0].mxu0
    %v685 = vadd.f32 0.0, %v684
    %686 = vdwg.mxu0
    %v687 = vadd.f32 %v477, %v612
    %v688 = vadd.f32 %v478, %v614
    %v689 = vadd.f32 %v479, %v683
    %v690 = vadd.f32 %v480, %v685
    %v691 = vxor.u32 %v687, 2147483648
    %v692 = vxor.u32 %v688, 2147483648
    %v693 = vxor.u32 %v689, 2147483648
    %v694 = vmul.f32 %v691, 1.442695
    %v695 = vpow.pop %v694
    %v696 = vmul.f32 %v692, 1.442695
    %v697 = vpow.pop %v696
    %v698 = vmul.f32 %v693, 1.442695
    %v699 = vpow.pop %v698
    %v700 = vadd.f32 %v695, 1.0
    %v701 = vadd.f32 %v697, 1.0
    %v702 = vadd.f32 %v699, 1.0
    %v703 = vrcp.pop %v700
    %v704 = vmul.f32 1.0, %v703
    %v705 = vrcp.pop %v701
    %v706 = vmul.f32 1.0, %v705
    %v707 = vrcp.pop %v702
    %v708 = vmul.f32 1.0, %v707
    %v709 = vtanh.pop %v690
    %v710 = vmul.f32 %v706, %v473
    %v711 = vmul.f32 %v704, %v709
    %v712 = vadd.f32 %v710, %v711
    %v713 = vtanh.pop %v712
    %v714 = vmul.f32 %v708, %v713
    %s715 = scalar_lea.vmem [#allocation2], 64
    %v716 = vld [vmem:[%s715] sm:$0xff]
    %v717 = vld [vmem:[%s715 + $0x8] sm:$0xff]
    %v718 = vld [vmem:[%s715 + $0x10] sm:$0xff]
    %v719 = vld [vmem:[%s715 + $0x18] sm:$0xff]
    %720 = vmatprep.subr.mxu0 %v482
    %721 = vmatpush1.msra.mxu0 %v481
    %722 = vmatprep.subr.mxu0 %v486
    %723 = vmatpush1.msra.mxu0 %v485
    %724 = vmatprep.subr.mxu0 %v490
    %725 = vmatpush1.msra.mxu0 %v489
    %726 = vmatprep.subr.mxu0 %v494
    %727 = vmatpush1.msra.mxu0 %v493
    %728 = vmatprep.subr.mxu0 %v498
    %729 = vmatpush1.msra.mxu0 %v497
    %730 = vmatprep.subr.mxu0 %v502
    %731 = vmatpush1.msra.mxu0 %v501
    %732 = vmatprep.subr.mxu0 %v506
    %733 = vmatpush1.msra.mxu0 %v505
    %734 = vmatprep.subr.mxu0 %v510
    %735 = vmatpush1.msra.mxu0 %v509
    %736 = vmatprep.subr.mxu0 %v514
    %737 = vmatpush1.msra.mxu0 %v513
    %738 = vmatprep.subr.mxu0 %v518
    %739 = vmatpush1.msra.mxu0 %v517
    %740 = vmatprep.subr.mxu0 %v522
    %741 = vmatpush1.msra.mxu0 %v521
    %742 = vmatprep.subr.mxu0 %v526
    %743 = vmatpush1.msra.mxu0 %v525
    %744 = vmatprep.subr.mxu0 %v530
    %745 = vmatpush1.msra.mxu0 %v529
    %746 = vmatprep.subr.mxu0 %v534
    %747 = vmatpush1.msra.mxu0 %v533
    %748 = vmatprep.subr.mxu0 %v538
    %749 = vmatpush1.msra.mxu0 %v537
    %750 = vmatprep.subr.mxu0 %v542
    %751 = vmatpush1.msra.mxu0 %v541
    %752 = vmatprep.subr.mxu0 0.0
    %753 = vmatpush1.msra.mxu0 0.0
    %754 = vmatprep.subr.mxu0 0.0
    %755 = vmatpush1.msra.mxu0 0.0
    %756 = vmatprep.subr.mxu0 0.0
    %757 = vmatpush1.msra.mxu0 0.0
    %758 = vmatprep.subr.mxu0 0.0
    %759 = vmatpush1.msra.mxu0 0.0
    %760 = vmatprep.subr.mxu0 0.0
    %761 = vmatpush1.msra.mxu0 0.0
    %762 = vmatprep.subr.mxu0 0.0
    %763 = vmatpush1.msra.mxu0 0.0
    %764 = vmatprep.subr.mxu0 0.0
    %765 = vmatpush1.msra.mxu0 0.0
    %766 = vmatprep.subr.mxu0 0.0
    %767 = vmatpush1.msra.mxu0 0.0
    %768 = vmatprep.subr.mxu0 0.0
    %769 = vmatpush1.msra.mxu0 0.0
    %770 = vmatprep.subr.mxu0 0.0
    %771 = vmatpush1.msra.mxu0 0.0
    %772 = vmatprep.subr.mxu0 0.0
    %773 = vmatpush1.msra.mxu0 0.0
    %774 = vmatprep.subr.mxu0 0.0
    %775 = vmatpush1.msra.mxu0 0.0
    %776 = vmatprep.subr.mxu0 0.0
    %777 = vmatpush1.msra.mxu0 0.0
    %778 = vmatprep.subr.mxu0 0.0
    %779 = vmatpush1.msra.mxu0 0.0
    %780 = vmatprep.subr.mxu0 0.0
    %781 = vmatpush1.msra.mxu0 0.0
    %782 = vmatprep.subr.mxu0 0.0
    %783 = vmatpush1.msra.mxu0 0.0
    %784 = vmatprep.mubr.f32.mxu0 0.0
    %785 = vmatmul.mubr.f32.gmra.mrb[0].mxu0 %v714
    %v786 = vpop.f32.mrb[0].mxu0
    %v787 = vadd.f32 0.0, %v786
    %v788 = vpop.f32.mrb[0].mxu0
    %v789 = vadd.f32 0.0, %v788
    %790 = vdwg.mxu0
    %791 = vmatprep.subr.mxu0 %v484
    %792 = vmatpush1.msra.mxu0 %v483
    %793 = vmatprep.subr.mxu0 %v488
    %794 = vmatpush1.msra.mxu0 %v487
    %795 = vmatprep.subr.mxu0 %v492
    %796 = vmatpush1.msra.mxu0 %v491
    %797 = vmatprep.subr.mxu0 %v496
    %798 = vmatpush1.msra.mxu0 %v495
    %799 = vmatprep.subr.mxu0 %v500
    %800 = vmatpush1.msra.mxu0 %v499
    %801 = vmatprep.subr.mxu0 %v504
    %802 = vmatpush1.msra.mxu0 %v503
    %803 = vmatprep.subr.mxu0 %v508
    %804 = vmatpush1.msra.mxu0 %v507
    %805 = vmatprep.subr.mxu0 %v512
    %806 = vmatpush1.msra.mxu0 %v511
    %807 = vmatprep.subr.mxu0 %v516
    %808 = vmatpush1.msra.mxu0 %v515
    %809 = vmatprep.subr.mxu0 %v520
    %810 = vmatpush1.msra.mxu0 %v519
    %811 = vmatprep.subr.mxu0 %v524
    %812 = vmatpush1.msra.mxu0 %v523
    %813 = vmatprep.subr.mxu0 %v528
    %814 = vmatpush1.msra.mxu0 %v527
    %815 = vmatprep.subr.mxu0 %v532
    %816 = vmatpush1.msra.mxu0 %v531
    %817 = vmatprep.subr.mxu0 %v536
    %818 = vmatpush1.msra.mxu0 %v535
    %819 = vmatprep.subr.mxu0 %v540
    %820 = vmatpush1.msra.mxu0 %v539
    %821 = vmatprep.subr.mxu0 %v544
    %822 = vmatpush1.msra.mxu0 %v543
    %823 = vmatprep.subr.mxu0 0.0
    %824 = vmatpush1.msra.mxu0 0.0
    %825 = vmatprep.subr.mxu0 0.0
    %826 = vmatpush1.msra.mxu0 0.0
    %827 = vmatprep.subr.mxu0 0.0
    %828 = vmatpush1.msra.mxu0 0.0
    %829 = vmatprep.subr.mxu0 0.0
    %830 = vmatpush1.msra.mxu0 0.0
    %831 = vmatprep.subr.mxu0 0.0
    %832 = vmatpush1.msra.mxu0 0.0
    %833 = vmatprep.subr.mxu0 0.0
    %834 = vmatpush1.msra.mxu0 0.0
    %835 = vmatprep.subr.mxu0 0.0
    %836 = vmatpush1.msra.mxu0 0.0
    %837 = vmatprep.subr.mxu0 0.0
    %838 = vmatpush1.msra.mxu0 0.0
    %839 = vmatprep.subr.mxu0 0.0
    %840 = vmatpush1.msra.mxu0 0.0
    %841 = vmatprep.subr.mxu0 0.0
    %842 = vmatpush1.msra.mxu0 0.0
    %843 = vmatprep.subr.mxu0 0.0
    %844 = vmatpush1.msra.mxu0 0.0
    %845 = vmatprep.subr.mxu0 0.0
    %846 = vmatpush1.msra.mxu0 0.0
    %847 = vmatprep.subr.mxu0 0.0
    %848 = vmatpush1.msra.mxu0 0.0
    %849 = vmatprep.subr.mxu0 0.0
    %850 = vmatpush1.msra.mxu0 0.0
    %851 = vmatprep.subr.mxu0 0.0
    %852 = vmatpush1.msra.mxu0 0.0
    %853 = vmatprep.subr.mxu0 0.0
    %854 = vmatpush1.msra.mxu0 0.0
    %855 = vmatprep.mubr.f32.mxu0 0.0
    %856 = vmatmul.mubr.f32.gmra.mrb[0].mxu0 %v714
    %v857 = vpop.f32.mrb[0].mxu0
    %v858 = vadd.f32 0.0, %v857
    %v859 = vpop.f32.mrb[0].mxu0
    %v860 = vadd.f32 0.0, %v859
    %861 = vdwg.mxu0
    %v862 = vadd.f32 %v716, %v787
    %v863 = vadd.f32 %v717, %v789
    %v864 = vadd.f32 %v718, %v858
    %v865 = vadd.f32 %v719, %v860
    %v866 = vxor.u32 %v862, 2147483648
    %v867 = vxor.u32 %v863, 2147483648
    %v868 = vxor.u32 %v864, 2147483648
    %v869 = vmul.f32 %v866, 1.442695
    %v870 = vpow.pop %v869
    %v871 = vmul.f32 %v867, 1.442695
    %v872 = vpow.pop %v871
    %v873 = vmul.f32 %v868, 1.442695
    %v874 = vpow.pop %v873
    %v875 = vadd.f32 %v870, 1.0
    %v876 = vadd.f32 %v872, 1.0
    %v877 = vadd.f32 %v874, 1.0
    %v878 = vrcp.pop %v875
    %v879 = vmul.f32 1.0, %v878
    %v880 = vrcp.pop %v876
    %v881 = vmul.f32 1.0, %v880
    %v882 = vrcp.pop %v877
    %v883 = vmul.f32 1.0, %v882
    %v884 = vtanh.pop %v865
    %v885 = vmul.f32 %v881, %v712
    %v886 = vmul.f32 %v879, %v884
    %v887 = vadd.f32 %v885, %v886
    %v888 = vtanh.pop %v887
    %v889 = vmul.f32 %v883, %v888
    %s890 = scalar_lea.vmem [#allocation2], 96
    %v891 = vld [vmem:[%s890] sm:$0xff]
    %v892 = vld [vmem:[%s890 + $0x8] sm:$0xff]
    %v893 = vld [vmem:[%s890 + $0x10] sm:$0xff]
    %v894 = vld [vmem:[%s890 + $0x18] sm:$0xff]
    %895 = vmatprep.subr.mxu0 %v482
    %896 = vmatpush1.msra.mxu0 %v481
    %897 = vmatprep.subr.mxu0 %v486
    %898 = vmatpush1.msra.mxu0 %v485
    %899 = vmatprep.subr.mxu0 %v490
    %900 = vmatpush1.msra.mxu0 %v489
    %901 = vmatprep.subr.mxu0 %v494
    %902 = vmatpush1.msra.mxu0 %v493
    %903 = vmatprep.subr.mxu0 %v498
    %904 = vmatpush1.msra.mxu0 %v497
    %905 = vmatprep.subr.mxu0 %v502
    %906 = vmatpush1.msra.mxu0 %v501
    %907 = vmatprep.subr.mxu0 %v506
    %908 = vmatpush1.msra.mxu0 %v505
    %909 = vmatprep.subr.mxu0 %v510
    %910 = vmatpush1.msra.mxu0 %v509
    %911 = vmatprep.subr.mxu0 %v514
    %912 = vmatpush1.msra.mxu0 %v513
    %913 = vmatprep.subr.mxu0 %v518
    %914 = vmatpush1.msra.mxu0 %v517
    %915 = vmatprep.subr.mxu0 %v522
    %916 = vmatpush1.msra.mxu0 %v521
    %917 = vmatprep.subr.mxu0 %v526
    %918 = vmatpush1.msra.mxu0 %v525
    %919 = vmatprep.subr.mxu0 %v530
    %920 = vmatpush1.msra.mxu0 %v529
    %921 = vmatprep.subr.mxu0 %v534
    %922 = vmatpush1.msra.mxu0 %v533
    %923 = vmatprep.subr.mxu0 %v538
    %924 = vmatpush1.msra.mxu0 %v537
    %925 = vmatprep.subr.mxu0 %v542
    %926 = vmatpush1.msra.mxu0 %v541
    %927 = vmatprep.subr.mxu0 0.0
    %928 = vmatpush1.msra.mxu0 0.0
    %929 = vmatprep.subr.mxu0 0.0
    %930 = vmatpush1.msra.mxu0 0.0
    %931 = vmatprep.subr.mxu0 0.0
    %932 = vmatpush1.msra.mxu0 0.0
    %933 = vmatprep.subr.mxu0 0.0
    %934 = vmatpush1.msra.mxu0 0.0
    %935 = vmatprep.subr.mxu0 0.0
    %936 = vmatpush1.msra.mxu0 0.0
    %937 = vmatprep.subr.mxu0 0.0
    %938 = vmatpush1.msra.mxu0 0.0
    %939 = vmatprep.subr.mxu0 0.0
    %940 = vmatpush1.msra.mxu0 0.0
    %941 = vmatprep.subr.mxu0 0.0
    %942 = vmatpush1.msra.mxu0 0.0
    %943 = vmatprep.subr.mxu0 0.0
    %944 = vmatpush1.msra.mxu0 0.0
    %945 = vmatprep.subr.mxu0 0.0
    %946 = vmatpush1.msra.mxu0 0.0
    %947 = vmatprep.subr.mxu0 0.0
    %948 = vmatpush1.msra.mxu0 0.0
    %949 = vmatprep.subr.mxu0 0.0
    %950 = vmatpush1.msra.mxu0 0.0
    %951 = vmatprep.subr.mxu0 0.0
    %952 = vmatpush1.msra.mxu0 0.0
    %953 = vmatprep.subr.mxu0 0.0
    %954 = vmatpush1.msra.mxu0 0.0
    %955 = vmatprep.subr.mxu0 0.0
    %956 = vmatpush1.msra.mxu0 0.0
    %957 = vmatprep.subr.mxu0 0.0
    %958 = vmatpush1.msra.mxu0 0.0
    %959 = vmatprep.mubr.f32.mxu0 0.0
    %960 = vmatmul.mubr.f32.gmra.mrb[0].mxu0 %v889
    %v961 = vpop.f32.mrb[0].mxu0
    %v962 = vadd.f32 0.0, %v961
    %v963 = vpop.f32.mrb[0].mxu0
    %v964 = vadd.f32 0.0, %v963
    %965 = vdwg.mxu0
    %966 = vmatprep.subr.mxu0 %v484
    %967 = vmatpush1.msra.mxu0 %v483
    %968 = vmatprep.subr.mxu0 %v488
    %969 = vmatpush1.msra.mxu0 %v487
    %970 = vmatprep.subr.mxu0 %v492
    %971 = vmatpush1.msra.mxu0 %v491
    %972 = vmatprep.subr.mxu0 %v496
    %973 = vmatpush1.msra.mxu0 %v495
    %974 = vmatprep.subr.mxu0 %v500
    %975 = vmatpush1.msra.mxu0 %v499
    %976 = vmatprep.subr.mxu0 %v504
    %977 = vmatpush1.msra.mxu0 %v503
    %978 = vmatprep.subr.mxu0 %v508
    %979 = vmatpush1.msra.mxu0 %v507
    %980 = vmatprep.subr.mxu0 %v512
    %981 = vmatpush1.msra.mxu0 %v511
    %982 = vmatprep.subr.mxu0 %v516
    %983 = vmatpush1.msra.mxu0 %v515
    %984 = vmatprep.subr.mxu0 %v520
    %985 = vmatpush1.msra.mxu0 %v519
    %986 = vmatprep.subr.mxu0 %v524
    %987 = vmatpush1.msra.mxu0 %v523
    %988 = vmatprep.subr.mxu0 %v528
    %989 = vmatpush1.msra.mxu0 %v527
    %990 = vmatprep.subr.mxu0 %v532
    %991 = vmatpush1.msra.mxu0 %v531
    %992 = vmatprep.subr.mxu0 %v536
    %993 = vmatpush1.msra.mxu0 %v535
    %994 = vmatprep.subr.mxu0 %v540
    %995 = vmatpush1.msra.mxu0 %v539
    %996 = vmatprep.subr.mxu0 %v544
    %997 = vmatpush1.msra.mxu0 %v543
    %998 = vmatprep.subr.mxu0 0.0
    %999 = vmatpush1.msra.mxu0 0.0
    %1000 = vmatprep.subr.mxu0 0.0
    %1001 = vmatpush1.msra.mxu0 0.0
    %1002 = vmatprep.subr.mxu0 0.0
    %1003 = vmatpush1.msra.mxu0 0.0
    %1004 = vmatprep.subr.mxu0 0.0
    %1005 = vmatpush1.msra.mxu0 0.0
    %1006 = vmatprep.subr.mxu0 0.0
    %1007 = vmatpush1.msra.mxu0 0.0
    %1008 = vmatprep.subr.mxu0 0.0
    %1009 = vmatpush1.msra.mxu0 0.0
    %1010 = vmatprep.subr.mxu0 0.0
    %1011 = vmatpush1.msra.mxu0 0.0
    %1012 = vmatprep.subr.mxu0 0.0
    %1013 = vmatpush1.msra.mxu0 0.0
    %1014 = vmatprep.subr.mxu0 0.0
    %1015 = vmatpush1.msra.mxu0 0.0
    %1016 = vmatprep.subr.mxu0 0.0
    %1017 = vmatpush1.msra.mxu0 0.0
    %1018 = vmatprep.subr.mxu0 0.0
    %1019 = vmatpush1.msra.mxu0 0.0
    %1020 = vmatprep.subr.mxu0 0.0
    %1021 = vmatpush1.msra.mxu0 0.0
    %1022 = vmatprep.subr.mxu0 0.0
    %1023 = vmatpush1.msra.mxu0 0.0
    %1024 = vmatprep.subr.mxu0 0.0
    %1025 = vmatpush1.msra.mxu0 0.0
    %1026 = vmatprep.subr.mxu0 0.0
    %1027 = vmatpush1.msra.mxu0 0.0
    %1028 = vmatprep.subr.mxu0 0.0
    %1029 = vmatpush1.msra.mxu0 0.0
    %1030 = vmatprep.mubr.f32.mxu0 0.0
    %1031 = vmatmul.mubr.f32.gmra.mrb[0].mxu0 %v889
    %v1032 = vpop.f32.mrb[0].mxu0
    %v1033 = vadd.f32 0.0, %v1032
    %v1034 = vpop.f32.mrb[0].mxu0
    %v1035 = vadd.f32 0.0, %v1034
    %1036 = vdwg.mxu0
    %v1037 = vadd.f32 %v891, %v962
    %v1038 = vadd.f32 %v892, %v964
    %v1039 = vadd.f32 %v893, %v1033
    %v1040 = vadd.f32 %v894, %v1035
    %v1041 = vxor.u32 %v1037, 2147483648
    %v1042 = vxor.u32 %v1038, 2147483648
    %v1043 = vxor.u32 %v1039, 2147483648
    %v1044 = vmul.f32 %v1041, 1.442695
    %v1045 = vpow.pop %v1044
    %v1046 = vmul.f32 %v1042, 1.442695
    %v1047 = vpow.pop %v1046
    %v1048 = vmul.f32 %v1043, 1.442695
    %v1049 = vpow.pop %v1048
    %v1050 = vadd.f32 %v1045, 1.0
    %v1051 = vadd.f32 %v1047, 1.0
    %v1052 = vadd.f32 %v1049, 1.0
    %v1053 = vrcp.pop %v1050
    %v1054 = vmul.f32 1.0, %v1053
    %v1055 = vrcp.pop %v1051
    %v1056 = vmul.f32 1.0, %v1055
    %v1057 = vrcp.pop %v1052
    %v1058 = vmul.f32 1.0, %v1057
    %v1059 = vtanh.pop %v1040
    %v1060 = vmul.f32 %v1056, %v887
    %v1061 = vmul.f32 %v1054, %v1059
    %v1062 = vadd.f32 %v1060, %v1061
    %v1063 = vtanh.pop %v1062
    %v1064 = vmul.f32 %v1058, %v1063
    %s1065 = scalar_lea.vmem [#allocation2], 128
    %v1066 = vld [vmem:[%s1065] sm:$0xff]
    %v1067 = vld [vmem:[%s1065 + $0x8] sm:$0xff]
    %v1068 = vld [vmem:[%s1065 + $0x10] sm:$0xff]
    %v1069 = vld [vmem:[%s1065 + $0x18] sm:$0xff]
    %1070 = vmatprep.subr.mxu0 %v482
    %1071 = vmatpush1.msra.mxu0 %v481
    %1072 = vmatprep.subr.mxu0 %v486
    %1073 = vmatpush1.msra.mxu0 %v485
    %1074 = vmatprep.subr.mxu0 %v490
    %1075 = vmatpush1.msra.mxu0 %v489
    %1076 = vmatprep.subr.mxu0 %v494
    %1077 = vmatpush1.msra.mxu0 %v493
    %1078 = vmatprep.subr.mxu0 %v498
    %1079 = vmatpush1.msra.mxu0 %v497
    %1080 = vmatprep.subr.mxu0 %v502
    %1081 = vmatpush1.msra.mxu0 %v501
    %1082 = vmatprep.subr.mxu0 %v506
    %1083 = vmatpush1.msra.mxu0 %v505
    %1084 = vmatprep.subr.mxu0 %v510
    %1085 = vmatpush1.msra.mxu0 %v509
    %1086 = vmatprep.subr.mxu0 %v514
    %1087 = vmatpush1.msra.mxu0 %v513
    %1088 = vmatprep.subr.mxu0 %v518
    %1089 = vmatpush1.msra.mxu0 %v517
    %1090 = vmatprep.subr.mxu0 %v522
    %1091 = vmatpush1.msra.mxu0 %v521
    %1092 = vmatprep.subr.mxu0 %v526
    %1093 = vmatpush1.msra.mxu0 %v525
    %1094 = vmatprep.subr.mxu0 %v530
    %1095 = vmatpush1.msra.mxu0 %v529
    %1096 = vmatprep.subr.mxu0 %v534
    %1097 = vmatpush1.msra.mxu0 %v533
    %1098 = vmatprep.subr.mxu0 %v538
    %1099 = vmatpush1.msra.mxu0 %v537
    %1100 = vmatprep.subr.mxu0 %v542
    %1101 = vmatpush1.msra.mxu0 %v541
    %1102 = vmatprep.subr.mxu0 0.0
    %1103 = vmatpush1.msra.mxu0 0.0
    %1104 = vmatprep.subr.mxu0 0.0
    %1105 = vmatpush1.msra.mxu0 0.0
    %1106 = vmatprep.subr.mxu0 0.0
    %1107 = vmatpush1.msra.mxu0 0.0
    %1108 = vmatprep.subr.mxu0 0.0
    %1109 = vmatpush1.msra.mxu0 0.0
    %1110 = vmatprep.subr.mxu0 0.0
    %1111 = vmatpush1.msra.mxu0 0.0
    %1112 = vmatprep.subr.mxu0 0.0
    %1113 = vmatpush1.msra.mxu0 0.0
    %1114 = vmatprep.subr.mxu0 0.0
    %1115 = vmatpush1.msra.mxu0 0.0
    %1116 = vmatprep.subr.mxu0 0.0
    %1117 = vmatpush1.msra.mxu0 0.0
    %1118 = vmatprep.subr.mxu0 0.0
    %1119 = vmatpush1.msra.mxu0 0.0
    %1120 = vmatprep.subr.mxu0 0.0
    %1121 = vmatpush1.msra.mxu0 0.0
    %1122 = vmatprep.subr.mxu0 0.0
    %1123 = vmatpush1.msra.mxu0 0.0
    %1124 = vmatprep.subr.mxu0 0.0
    %1125 = vmatpush1.msra.mxu0 0.0
    %1126 = vmatprep.subr.mxu0 0.0
    %1127 = vmatpush1.msra.mxu0 0.0
    %1128 = vmatprep.subr.mxu0 0.0
    %1129 = vmatpush1.msra.mxu0 0.0
    %1130 = vmatprep.subr.mxu0 0.0
    %1131 = vmatpush1.msra.mxu0 0.0
    %1132 = vmatprep.subr.mxu0 0.0
    %1133 = vmatpush1.msra.mxu0 0.0
    %1134 = vmatprep.mubr.f32.mxu0 0.0
    %1135 = vmatmul.mubr.f32.gmra.mrb[0].mxu0 %v1064
    %v1136 = vpop.f32.mrb[0].mxu0
    %v1137 = vadd.f32 0.0, %v1136
    %v1138 = vpop.f32.mrb[0].mxu0
    %v1139 = vadd.f32 0.0, %v1138
    %1140 = vdwg.mxu0
    %1141 = vmatprep.subr.mxu0 %v484
    %1142 = vmatpush1.msra.mxu0 %v483
    %1143 = vmatprep.subr.mxu0 %v488
    %1144 = vmatpush1.msra.mxu0 %v487
    %1145 = vmatprep.subr.mxu0 %v492
    %1146 = vmatpush1.msra.mxu0 %v491
    %1147 = vmatprep.subr.mxu0 %v496
    %1148 = vmatpush1.msra.mxu0 %v495
    %1149 = vmatprep.subr.mxu0 %v500
    %1150 = vmatpush1.msra.mxu0 %v499
    %1151 = vmatprep.subr.mxu0 %v504
    %1152 = vmatpush1.msra.mxu0 %v503
    %1153 = vmatprep.subr.mxu0 %v508
    %1154 = vmatpush1.msra.mxu0 %v507
    %1155 = vmatprep.subr.mxu0 %v512
    %1156 = vmatpush1.msra.mxu0 %v511
    %1157 = vmatprep.subr.mxu0 %v516
    %1158 = vmatpush1.msra.mxu0 %v515
    %1159 = vmatprep.subr.mxu0 %v520
    %1160 = vmatpush1.msra.mxu0 %v519
    %1161 = vmatprep.subr.mxu0 %v524
    %1162 = vmatpush1.msra.mxu0 %v523
    %1163 = vmatprep.subr.mxu0 %v528
    %1164 = vmatpush1.msra.mxu0 %v527
    %1165 = vmatprep.subr.mxu0 %v532
    %1166 = vmatpush1.msra.mxu0 %v531
    %1167 = vmatprep.subr.mxu0 %v536
    %1168 = vmatpush1.msra.mxu0 %v535
    %1169 = vmatprep.subr.mxu0 %v540
    %1170 = vmatpush1.msra.mxu0 %v539
    %1171 = vmatprep.subr.mxu0 %v544
    %1172 = vmatpush1.msra.mxu0 %v543
    %1173 = vmatprep.subr.mxu0 0.0
    %1174 = vmatpush1.msra.mxu0 0.0
    %1175 = vmatprep.subr.mxu0 0.0
    %1176 = vmatpush1.msra.mxu0 0.0
    %1177 = vmatprep.subr.mxu0 0.0
    %1178 = vmatpush1.msra.mxu0 0.0
    %1179 = vmatprep.subr.mxu0 0.0
    %1180 = vmatpush1.msra.mxu0 0.0
    %1181 = vmatprep.subr.mxu0 0.0
    %1182 = vmatpush1.msra.mxu0 0.0
    %1183 = vmatprep.subr.mxu0 0.0
    %1184 = vmatpush1.msra.mxu0 0.0
    %1185 = vmatprep.subr.mxu0 0.0
    %1186 = vmatpush1.msra.mxu0 0.0
    %1187 = vmatprep.subr.mxu0 0.0
    %1188 = vmatpush1.msra.mxu0 0.0
    %1189 = vmatprep.subr.mxu0 0.0
    %1190 = vmatpush1.msra.mxu0 0.0
    %1191 = vmatprep.subr.mxu0 0.0
    %1192 = vmatpush1.msra.mxu0 0.0
    %1193 = vmatprep.subr.mxu0 0.0
    %1194 = vmatpush1.msra.mxu0 0.0
    %1195 = vmatprep.subr.mxu0 0.0
    %1196 = vmatpush1.msra.mxu0 0.0
    %1197 = vmatprep.subr.mxu0 0.0
    %1198 = vmatpush1.msra.mxu0 0.0
    %1199 = vmatprep.subr.mxu0 0.0
    %1200 = vmatpush1.msra.mxu0 0.0
    %1201 = vmatprep.subr.mxu0 0.0
    %1202 = vmatpush1.msra.mxu0 0.0
    %1203 = vmatprep.subr.mxu0 0.0
    %1204 = vmatpush1.msra.mxu0 0.0
    %1205 = vmatprep.mubr.f32.mxu0 0.0
    %1206 = vmatmul.mubr.f32.gmra.mrb[0].mxu0 %v1064
    %v1207 = vpop.f32.mrb[0].mxu0
    %v1208 = vadd.f32 0.0, %v1207
    %v1209 = vpop.f32.mrb[0].mxu0
    %v1210 = vadd.f32 0.0, %v1209
    %1211 = vdwg.mxu0
    %v1212 = vadd.f32 %v1066, %v1137
    %v1213 = vadd.f32 %v1067, %v1139
    %v1214 = vadd.f32 %v1068, %v1208
    %v1215 = vadd.f32 %v1069, %v1210
    %v1216 = vxor.u32 %v1212, 2147483648
    %v1217 = vxor.u32 %v1213, 2147483648
    %v1218 = vxor.u32 %v1214, 2147483648
    %v1219 = vmul.f32 %v1216, 1.442695
    %v1220 = vpow.pop %v1219
    %v1221 = vmul.f32 %v1217, 1.442695
    %v1222 = vpow.pop %v1221
    %v1223 = vmul.f32 %v1218, 1.442695
    %v1224 = vpow.pop %v1223
    %v1225 = vadd.f32 %v1220, 1.0
    %v1226 = vadd.f32 %v1222, 1.0
    %v1227 = vadd.f32 %v1224, 1.0
    %v1228 = vrcp.pop %v1225
    %v1229 = vmul.f32 1.0, %v1228
    %v1230 = vrcp.pop %v1226
    %v1231 = vmul.f32 1.0, %v1230
    %v1232 = vrcp.pop %v1227
    %v1233 = vmul.f32 1.0, %v1232
    %v1234 = vtanh.pop %v1215
    %v1235 = vmul.f32 %v1231, %v1062
    %v1236 = vmul.f32 %v1229, %v1234
    %v1237 = vadd.f32 %v1235, %v1236
    %v1238 = vtanh.pop %v1237
    %v1239 = vmul.f32 %v1233, %v1238
    %s1240 = scalar_lea.vmem [#allocation2], 160
    %v1241 = vld [vmem:[%s1240] sm:$0xff]
    %v1242 = vld [vmem:[%s1240 + $0x8] sm:$0xff]
    %v1243 = vld [vmem:[%s1240 + $0x10] sm:$0xff]
    %v1244 = vld [vmem:[%s1240 + $0x18] sm:$0xff]
    %1245 = vmatprep.subr.mxu0 %v482
    %1246 = vmatpush1.msra.mxu0 %v481
    %1247 = vmatprep.subr.mxu0 %v486
    %1248 = vmatpush1.msra.mxu0 %v485
    %1249 = vmatprep.subr.mxu0 %v490
    %1250 = vmatpush1.msra.mxu0 %v489
    %1251 = vmatprep.subr.mxu0 %v494
    %1252 = vmatpush1.msra.mxu0 %v493
    %1253 = vmatprep.subr.mxu0 %v498
    %1254 = vmatpush1.msra.mxu0 %v497
    %1255 = vmatprep.subr.mxu0 %v502
    %1256 = vmatpush1.msra.mxu0 %v501
    %1257 = vmatprep.subr.mxu0 %v506
    %1258 = vmatpush1.msra.mxu0 %v505
    %1259 = vmatprep.subr.mxu0 %v510
    %1260 = vmatpush1.msra.mxu0 %v509
    %1261 = vmatprep.subr.mxu0 %v514
    %1262 = vmatpush1.msra.mxu0 %v513
    %1263 = vmatprep.subr.mxu0 %v518
    %1264 = vmatpush1.msra.mxu0 %v517
    %1265 = vmatprep.subr.mxu0 %v522
    %1266 = vmatpush1.msra.mxu0 %v521
    %1267 = vmatprep.subr.mxu0 %v526
    %1268 = vmatpush1.msra.mxu0 %v525
    %1269 = vmatprep.subr.mxu0 %v530
    %1270 = vmatpush1.msra.mxu0 %v529
    %1271 = vmatprep.subr.mxu0 %v534
    %1272 = vmatpush1.msra.mxu0 %v533
    %1273 = vmatprep.subr.mxu0 %v538
    %1274 = vmatpush1.msra.mxu0 %v537
    %1275 = vmatprep.subr.mxu0 %v542
    %1276 = vmatpush1.msra.mxu0 %v541
    %1277 = vmatprep.subr.mxu0 0.0
    %1278 = vmatpush1.msra.mxu0 0.0
    %1279 = vmatprep.subr.mxu0 0.0
    %1280 = vmatpush1.msra.mxu0 0.0
    %1281 = vmatprep.subr.mxu0 0.0
    %1282 = vmatpush1.msra.mxu0 0.0
    %1283 = vmatprep.subr.mxu0 0.0
    %1284 = vmatpush1.msra.mxu0 0.0
    %1285 = vmatprep.subr.mxu0 0.0
    %1286 = vmatpush1.msra.mxu0 0.0
    %1287 = vmatprep.subr.mxu0 0.0
    %1288 = vmatpush1.msra.mxu0 0.0
    %1289 = vmatprep.subr.mxu0 0.0
    %1290 = vmatpush1.msra.mxu0 0.0
    %1291 = vmatprep.subr.mxu0 0.0
    %1292 = vmatpush1.msra.mxu0 0.0
    %1293 = vmatprep.subr.mxu0 0.0
    %1294 = vmatpush1.msra.mxu0 0.0
    %1295 = vmatprep.subr.mxu0 0.0
    %1296 = vmatpush1.msra.mxu0 0.0
    %1297 = vmatprep.subr.mxu0 0.0
    %1298 = vmatpush1.msra.mxu0 0.0
    %1299 = vmatprep.subr.mxu0 0.0
    %1300 = vmatpush1.msra.mxu0 0.0
    %1301 = vmatprep.subr.mxu0 0.0
    %1302 = vmatpush1.msra.mxu0 0.0
    %1303 = vmatprep.subr.mxu0 0.0
    %1304 = vmatpush1.msra.mxu0 0.0
    %1305 = vmatprep.subr.mxu0 0.0
    %1306 = vmatpush1.msra.mxu0 0.0
    %1307 = vmatprep.subr.mxu0 0.0
    %1308 = vmatpush1.msra.mxu0 0.0
    %1309 = vmatprep.mubr.f32.mxu0 0.0
    %1310 = vmatmul.mubr.f32.gmra.mrb[0].mxu0 %v1239
    %v1311 = vpop.f32.mrb[0].mxu0
    %v1312 = vadd.f32 0.0, %v1311
    %v1313 = vpop.f32.mrb[0].mxu0
    %v1314 = vadd.f32 0.0, %v1313
    %1315 = vdwg.mxu0
    %1316 = vmatprep.subr.mxu0 %v484
    %1317 = vmatpush1.msra.mxu0 %v483
    %1318 = vmatprep.subr.mxu0 %v488
    %1319 = vmatpush1.msra.mxu0 %v487
    %1320 = vmatprep.subr.mxu0 %v492
    %1321 = vmatpush1.msra.mxu0 %v491
    %1322 = vmatprep.subr.mxu0 %v496
    %1323 = vmatpush1.msra.mxu0 %v495
    %1324 = vmatprep.subr.mxu0 %v500
    %1325 = vmatpush1.msra.mxu0 %v499
    %1326 = vmatprep.subr.mxu0 %v504
    %1327 = vmatpush1.msra.mxu0 %v503
    %1328 = vmatprep.subr.mxu0 %v508
    %1329 = vmatpush1.msra.mxu0 %v507
    %1330 = vmatprep.subr.mxu0 %v512
    %1331 = vmatpush1.msra.mxu0 %v511
    %1332 = vmatprep.subr.mxu0 %v516
    %1333 = vmatpush1.msra.mxu0 %v515
    %1334 = vmatprep.subr.mxu0 %v520
    %1335 = vmatpush1.msra.mxu0 %v519
    %1336 = vmatprep.subr.mxu0 %v524
    %1337 = vmatpush1.msra.mxu0 %v523
    %1338 = vmatprep.subr.mxu0 %v528
    %1339 = vmatpush1.msra.mxu0 %v527
    %1340 = vmatprep.subr.mxu0 %v532
    %1341 = vmatpush1.msra.mxu0 %v531
    %1342 = vmatprep.subr.mxu0 %v536
    %1343 = vmatpush1.msra.mxu0 %v535
    %1344 = vmatprep.subr.mxu0 %v540
    %1345 = vmatpush1.msra.mxu0 %v539
    %1346 = vmatprep.subr.mxu0 %v544
    %1347 = vmatpush1.msra.mxu0 %v543
    %1348 = vmatprep.subr.mxu0 0.0
    %1349 = vmatpush1.msra.mxu0 0.0
    %1350 = vmatprep.subr.mxu0 0.0
    %1351 = vmatpush1.msra.mxu0 0.0
    %1352 = vmatprep.subr.mxu0 0.0
    %1353 = vmatpush1.msra.mxu0 0.0
    %1354 = vmatprep.subr.mxu0 0.0
    %1355 = vmatpush1.msra.mxu0 0.0
    %1356 = vmatprep.subr.mxu0 0.0
    %1357 = vmatpush1.msra.mxu0 0.0
    %1358 = vmatprep.subr.mxu0 0.0
    %1359 = vmatpush1.msra.mxu0 0.0
    %1360 = vmatprep.subr.mxu0 0.0
    %1361 = vmatpush1.msra.mxu0 0.0
    %1362 = vmatprep.subr.mxu0 0.0
    %1363 = vmatpush1.msra.mxu0 0.0
    %1364 = vmatprep.subr.mxu0 0.0
    %1365 = vmatpush1.msra.mxu0 0.0
    %1366 = vmatprep.subr.mxu0 0.0
    %1367 = vmatpush1.msra.mxu0 0.0
    %1368 = vmatprep.subr.mxu0 0.0
    %1369 = vmatpush1.msra.mxu0 0.0
    %1370 = vmatprep.subr.mxu0 0.0
    %1371 = vmatpush1.msra.mxu0 0.0
    %1372 = vmatprep.subr.mxu0 0.0
    %1373 = vmatpush1.msra.mxu0 0.0
    %1374 = vmatprep.subr.mxu0 0.0
    %1375 = vmatpush1.msra.mxu0 0.0
    %1376 = vmatprep.subr.mxu0 0.0
    %1377 = vmatpush1.msra.mxu0 0.0
    %1378 = vmatprep.subr.mxu0 0.0
    %1379 = vmatpush1.msra.mxu0 0.0
    %1380 = vmatprep.mubr.f32.mxu0 0.0
    %1381 = vmatmul.mubr.f32.gmra.mrb[0].mxu0 %v1239
    %v1382 = vpop.f32.mrb[0].mxu0
    %v1383 = vadd.f32 0.0, %v1382
    %v1384 = vpop.f32.mrb[0].mxu0
    %v1385 = vadd.f32 0.0, %v1384
    %1386 = vdwg.mxu0
    %v1387 = vadd.f32 %v1241, %v1312
    %v1388 = vadd.f32 %v1242, %v1314
    %v1389 = vadd.f32 %v1243, %v1383
    %v1390 = vadd.f32 %v1244, %v1385
    %v1391 = vxor.u32 %v1387, 2147483648
    %v1392 = vxor.u32 %v1388, 2147483648
    %v1393 = vxor.u32 %v1389, 2147483648
    %v1394 = vmul.f32 %v1391, 1.442695
    %v1395 = vpow.pop %v1394
    %v1396 = vmul.f32 %v1392, 1.442695
    %v1397 = vpow.pop %v1396
    %v1398 = vmul.f32 %v1393, 1.442695
    %v1399 = vpow.pop %v1398
    %v1400 = vadd.f32 %v1395, 1.0
    %v1401 = vadd.f32 %v1397, 1.0
    %v1402 = vadd.f32 %v1399, 1.0
    %v1403 = vrcp.pop %v1400
    %v1404 = vmul.f32 1.0, %v1403
    %v1405 = vrcp.pop %v1401
    %v1406 = vmul.f32 1.0, %v1405
    %v1407 = vrcp.pop %v1402
    %v1408 = vmul.f32 1.0, %v1407
    %v1409 = vtanh.pop %v1390
    %v1410 = vmul.f32 %v1406, %v1237
    %v1411 = vmul.f32 %v1404, %v1409
    %v1412 = vadd.f32 %v1410, %v1411
    %v1413 = vtanh.pop %v1412
    %v1414 = vmul.f32 %v1408, %v1413
    %s1415 = scalar_lea.vmem [#allocation2], 192
    %v1416 = vld [vmem:[%s1415] sm:$0xff]
    %v1417 = vld [vmem:[%s1415 + $0x8] sm:$0xff]
    %v1418 = vld [vmem:[%s1415 + $0x10] sm:$0xff]
    %v1419 = vld [vmem:[%s1415 + $0x18] sm:$0xff]
    %1420 = vmatprep.subr.mxu0 %v482
    %1421 = vmatpush1.msra.mxu0 %v481
    %1422 = vmatprep.subr.mxu0 %v486
    %1423 = vmatpush1.msra.mxu0 %v485
    %1424 = vmatprep.subr.mxu0 %v490
    %1425 = vmatpush1.msra.mxu0 %v489
    %1426 = vmatprep.subr.mxu0 %v494
    %1427 = vmatpush1.msra.mxu0 %v493
    %1428 = vmatprep.subr.mxu0 %v498
    %1429 = vmatpush1.msra.mxu0 %v497
    %1430 = vmatprep.subr.mxu0 %v502
    %1431 = vmatpush1.msra.mxu0 %v501
    %1432 = vmatprep.subr.mxu0 %v506
    %1433 = vmatpush1.msra.mxu0 %v505
    %1434 = vmatprep.subr.mxu0 %v510
    %1435 = vmatpush1.msra.mxu0 %v509
    %1436 = vmatprep.subr.mxu0 %v514
    %1437 = vmatpush1.msra.mxu0 %v513
    %1438 = vmatprep.subr.mxu0 %v518
    %1439 = vmatpush1.msra.mxu0 %v517
    %1440 = vmatprep.subr.mxu0 %v522
    %1441 = vmatpush1.msra.mxu0 %v521
    %1442 = vmatprep.subr.mxu0 %v526
    %1443 = vmatpush1.msra.mxu0 %v525
    %1444 = vmatprep.subr.mxu0 %v530
    %1445 = vmatpush1.msra.mxu0 %v529
    %1446 = vmatprep.subr.mxu0 %v534
    %1447 = vmatpush1.msra.mxu0 %v533
    %1448 = vmatprep.subr.mxu0 %v538
    %1449 = vmatpush1.msra.mxu0 %v537
    %1450 = vmatprep.subr.mxu0 %v542
    %1451 = vmatpush1.msra.mxu0 %v541
    %1452 = vmatprep.subr.mxu0 0.0
    %1453 = vmatpush1.msra.mxu0 0.0
    %1454 = vmatprep.subr.mxu0 0.0
    %1455 = vmatpush1.msra.mxu0 0.0
    %1456 = vmatprep.subr.mxu0 0.0
    %1457 = vmatpush1.msra.mxu0 0.0
    %1458 = vmatprep.subr.mxu0 0.0
    %1459 = vmatpush1.msra.mxu0 0.0
    %1460 = vmatprep.subr.mxu0 0.0
    %1461 = vmatpush1.msra.mxu0 0.0
    %1462 = vmatprep.subr.mxu0 0.0
    %1463 = vmatpush1.msra.mxu0 0.0
    %1464 = vmatprep.subr.mxu0 0.0
    %1465 = vmatpush1.msra.mxu0 0.0
    %1466 = vmatprep.subr.mxu0 0.0
    %1467 = vmatpush1.msra.mxu0 0.0
    %1468 = vmatprep.subr.mxu0 0.0
    %1469 = vmatpush1.msra.mxu0 0.0
    %1470 = vmatprep.subr.mxu0 0.0
    %1471 = vmatpush1.msra.mxu0 0.0
    %1472 = vmatprep.subr.mxu0 0.0
    %1473 = vmatpush1.msra.mxu0 0.0
    %1474 = vmatprep.subr.mxu0 0.0
    %1475 = vmatpush1.msra.mxu0 0.0
    %1476 = vmatprep.subr.mxu0 0.0
    %1477 = vmatpush1.msra.mxu0 0.0
    %1478 = vmatprep.subr.mxu0 0.0
    %1479 = vmatpush1.msra.mxu0 0.0
    %1480 = vmatprep.subr.mxu0 0.0
    %1481 = vmatpush1.msra.mxu0 0.0
    %1482 = vmatprep.subr.mxu0 0.0
    %1483 = vmatpush1.msra.mxu0 0.0
    %1484 = vmatprep.mubr.f32.mxu0 0.0
    %1485 = vmatmul.mubr.f32.gmra.mrb[0].mxu0 %v1414
    %v1486 = vpop.f32.mrb[0].mxu0
    %v1487 = vadd.f32 0.0, %v1486
    %v1488 = vpop.f32.mrb[0].mxu0
    %v1489 = vadd.f32 0.0, %v1488
    %1490 = vdwg.mxu0
    %1491 = vmatprep.subr.mxu0 %v484
    %1492 = vmatpush1.msra.mxu0 %v483
    %1493 = vmatprep.subr.mxu0 %v488
    %1494 = vmatpush1.msra.mxu0 %v487
    %1495 = vmatprep.subr.mxu0 %v492
    %1496 = vmatpush1.msra.mxu0 %v491
    %1497 = vmatprep.subr.mxu0 %v496
    %1498 = vmatpush1.msra.mxu0 %v495
    %1499 = vmatprep.subr.mxu0 %v500
    %1500 = vmatpush1.msra.mxu0 %v499
    %1501 = vmatprep.subr.mxu0 %v504
    %1502 = vmatpush1.msra.mxu0 %v503
    %1503 = vmatprep.subr.mxu0 %v508
    %1504 = vmatpush1.msra.mxu0 %v507
    %1505 = vmatprep.subr.mxu0 %v512
    %1506 = vmatpush1.msra.mxu0 %v511
    %1507 = vmatprep.subr.mxu0 %v516
    %1508 = vmatpush1.msra.mxu0 %v515
    %1509 = vmatprep.subr.mxu0 %v520
    %1510 = vmatpush1.msra.mxu0 %v519
    %1511 = vmatprep.subr.mxu0 %v524
    %1512 = vmatpush1.msra.mxu0 %v523
    %1513 = vmatprep.subr.mxu0 %v528
    %1514 = vmatpush1.msra.mxu0 %v527
    %1515 = vmatprep.subr.mxu0 %v532
    %1516 = vmatpush1.msra.mxu0 %v531
    %1517 = vmatprep.subr.mxu0 %v536
    %1518 = vmatpush1.msra.mxu0 %v535
    %1519 = vmatprep.subr.mxu0 %v540
    %1520 = vmatpush1.msra.mxu0 %v539
    %1521 = vmatprep.subr.mxu0 %v544
    %1522 = vmatpush1.msra.mxu0 %v543
    %1523 = vmatprep.subr.mxu0 0.0
    %1524 = vmatpush1.msra.mxu0 0.0
    %1525 = vmatprep.subr.mxu0 0.0
    %1526 = vmatpush1.msra.mxu0 0.0
    %1527 = vmatprep.subr.mxu0 0.0
    %1528 = vmatpush1.msra.mxu0 0.0
    %1529 = vmatprep.subr.mxu0 0.0
    %1530 = vmatpush1.msra.mxu0 0.0
    %1531 = vmatprep.subr.mxu0 0.0
    %1532 = vmatpush1.msra.mxu0 0.0
    %1533 = vmatprep.subr.mxu0 0.0
    %1534 = vmatpush1.msra.mxu0 0.0
    %1535 = vmatprep.subr.mxu0 0.0
    %1536 = vmatpush1.msra.mxu0 0.0
    %1537 = vmatprep.subr.mxu0 0.0
    %1538 = vmatpush1.msra.mxu0 0.0
    %1539 = vmatprep.subr.mxu0 0.0
    %1540 = vmatpush1.msra.mxu0 0.0
    %1541 = vmatprep.subr.mxu0 0.0
    %1542 = vmatpush1.msra.mxu0 0.0
    %1543 = vmatprep.subr.mxu0 0.0
    %1544 = vmatpush1.msra.mxu0 0.0
    %1545 = vmatprep.subr.mxu0 0.0
    %1546 = vmatpush1.msra.mxu0 0.0
    %1547 = vmatprep.subr.mxu0 0.0
    %1548 = vmatpush1.msra.mxu0 0.0
    %1549 = vmatprep.subr.mxu0 0.0
    %1550 = vmatpush1.msra.mxu0 0.0
    %1551 = vmatprep.subr.mxu0 0.0
    %1552 = vmatpush1.msra.mxu0 0.0
    %1553 = vmatprep.subr.mxu0 0.0
    %1554 = vmatpush1.msra.mxu0 0.0
    %1555 = vmatprep.mubr.f32.mxu0 0.0
    %1556 = vmatmul.mubr.f32.gmra.mrb[0].mxu0 %v1414
    %v1557 = vpop.f32.mrb[0].mxu0
    %v1558 = vadd.f32 0.0, %v1557
    %v1559 = vpop.f32.mrb[0].mxu0
    %v1560 = vadd.f32 0.0, %v1559
    %1561 = vdwg.mxu0
    %v1562 = vadd.f32 %v1416, %v1487
    %v1563 = vadd.f32 %v1417, %v1489
    %v1564 = vadd.f32 %v1418, %v1558
    %v1565 = vadd.f32 %v1419, %v1560
    %v1566 = vxor.u32 %v1562, 2147483648
    %v1567 = vxor.u32 %v1563, 2147483648
    %v1568 = vxor.u32 %v1564, 2147483648
    %v1569 = vmul.f32 %v1566, 1.442695
    %v1570 = vpow.pop %v1569
    %v1571 = vmul.f32 %v1567, 1.442695
    %v1572 = vpow.pop %v1571
    %v1573 = vmul.f32 %v1568, 1.442695
    %v1574 = vpow.pop %v1573
    %v1575 = vadd.f32 %v1570, 1.0
    %v1576 = vadd.f32 %v1572, 1.0
    %v1577 = vadd.f32 %v1574, 1.0
    %v1578 = vrcp.pop %v1575
    %v1579 = vmul.f32 1.0, %v1578
    %v1580 = vrcp.pop %v1576
    %v1581 = vmul.f32 1.0, %v1580
    %v1582 = vrcp.pop %v1577
    %v1583 = vmul.f32 1.0, %v1582
    %v1584 = vtanh.pop %v1565
    %v1585 = vmul.f32 %v1581, %v1412
    %v1586 = vmul.f32 %v1579, %v1584
    %v1587 = vadd.f32 %v1585, %v1586
    %v1588 = vtanh.pop %v1587
    %v1589 = vmul.f32 %v1583, %v1588
    %s1590 = scalar_lea.vmem [#allocation2], 224
    %v1591 = vld [vmem:[%s1590] sm:$0xff]
    %v1592 = vld [vmem:[%s1590 + $0x8] sm:$0xff]
    %v1593 = vld [vmem:[%s1590 + $0x10] sm:$0xff]
    %v1594 = vld [vmem:[%s1590 + $0x18] sm:$0xff]
    %1595 = vmatprep.subr.mxu0 %v482
    %1596 = vmatpush1.msra.mxu0 %v481
    %1597 = vmatprep.subr.mxu0 %v486
    %1598 = vmatpush1.msra.mxu0 %v485
    %1599 = vmatprep.subr.mxu0 %v490
    %1600 = vmatpush1.msra.mxu0 %v489
    %1601 = vmatprep.subr.mxu0 %v494
    %1602 = vmatpush1.msra.mxu0 %v493
    %1603 = vmatprep.subr.mxu0 %v498
    %1604 = vmatpush1.msra.mxu0 %v497
    %1605 = vmatprep.subr.mxu0 %v502
    %1606 = vmatpush1.msra.mxu0 %v501
    %1607 = vmatprep.subr.mxu0 %v506
    %1608 = vmatpush1.msra.mxu0 %v505
    %1609 = vmatprep.subr.mxu0 %v510
    %1610 = vmatpush1.msra.mxu0 %v509
    %1611 = vmatprep.subr.mxu0 %v514
    %1612 = vmatpush1.msra.mxu0 %v513
    %1613 = vmatprep.subr.mxu0 %v518
    %1614 = vmatpush1.msra.mxu0 %v517
    %1615 = vmatprep.subr.mxu0 %v522
    %1616 = vmatpush1.msra.mxu0 %v521
    %1617 = vmatprep.subr.mxu0 %v526
    %1618 = vmatpush1.msra.mxu0 %v525
    %1619 = vmatprep.subr.mxu0 %v530
    %1620 = vmatpush1.msra.mxu0 %v529
    %1621 = vmatprep.subr.mxu0 %v534
    %1622 = vmatpush1.msra.mxu0 %v533
    %1623 = vmatprep.subr.mxu0 %v538
    %1624 = vmatpush1.msra.mxu0 %v537
    %1625 = vmatprep.subr.mxu0 %v542
    %1626 = vmatpush1.msra.mxu0 %v541
    %1627 = vmatprep.subr.mxu0 0.0
    %1628 = vmatpush1.msra.mxu0 0.0
    %1629 = vmatprep.subr.mxu0 0.0
    %1630 = vmatpush1.msra.mxu0 0.0
    %1631 = vmatprep.subr.mxu0 0.0
    %1632 = vmatpush1.msra.mxu0 0.0
    %1633 = vmatprep.subr.mxu0 0.0
    %1634 = vmatpush1.msra.mxu0 0.0
    %1635 = vmatprep.subr.mxu0 0.0
    %1636 = vmatpush1.msra.mxu0 0.0
    %1637 = vmatprep.subr.mxu0 0.0
    %1638 = vmatpush1.msra.mxu0 0.0
    %1639 = vmatprep.subr.mxu0 0.0
    %1640 = vmatpush1.msra.mxu0 0.0
    %1641 = vmatprep.subr.mxu0 0.0
    %1642 = vmatpush1.msra.mxu0 0.0
    %1643 = vmatprep.subr.mxu0 0.0
    %1644 = vmatpush1.msra.mxu0 0.0
    %1645 = vmatprep.subr.mxu0 0.0
    %1646 = vmatpush1.msra.mxu0 0.0
    %1647 = vmatprep.subr.mxu0 0.0
    %1648 = vmatpush1.msra.mxu0 0.0
    %1649 = vmatprep.subr.mxu0 0.0
    %1650 = vmatpush1.msra.mxu0 0.0
    %1651 = vmatprep.subr.mxu0 0.0
    %1652 = vmatpush1.msra.mxu0 0.0
    %1653 = vmatprep.subr.mxu0 0.0
    %1654 = vmatpush1.msra.mxu0 0.0
    %1655 = vmatprep.subr.mxu0 0.0
    %1656 = vmatpush1.msra.mxu0 0.0
    %1657 = vmatprep.subr.mxu0 0.0
    %1658 = vmatpush1.msra.mxu0 0.0
    %1659 = vmatprep.mubr.f32.mxu0 0.0
    %1660 = vmatmul.mubr.f32.gmra.mrb[0].mxu0 %v1589
    %v1661 = vpop.f32.mrb[0].mxu0
    %v1662 = vadd.f32 0.0, %v1661
    %v1663 = vpop.f32.mrb[0].mxu0
    %v1664 = vadd.f32 0.0, %v1663
    %1665 = vdwg.mxu0
    %1666 = vmatprep.subr.mxu0 %v484
    %1667 = vmatpush1.msra.mxu0 %v483
    %1668 = vmatprep.subr.mxu0 %v488
    %1669 = vmatpush1.msra.mxu0 %v487
    %1670 = vmatprep.subr.mxu0 %v492
    %1671 = vmatpush1.msra.mxu0 %v491
    %1672 = vmatprep.subr.mxu0 %v496
    %1673 = vmatpush1.msra.mxu0 %v495
    %1674 = vmatprep.subr.mxu0 %v500
    %1675 = vmatpush1.msra.mxu0 %v499
    %1676 = vmatprep.subr.mxu0 %v504
    %1677 = vmatpush1.msra.mxu0 %v503
    %1678 = vmatprep.subr.mxu0 %v508
    %1679 = vmatpush1.msra.mxu0 %v507
    %1680 = vmatprep.subr.mxu0 %v512
    %1681 = vmatpush1.msra.mxu0 %v511
    %1682 = vmatprep.subr.mxu0 %v516
    %1683 = vmatpush1.msra.mxu0 %v515
    %1684 = vmatprep.subr.mxu0 %v520
    %1685 = vmatpush1.msra.mxu0 %v519
    %1686 = vmatprep.subr.mxu0 %v524
    %1687 = vmatpush1.msra.mxu0 %v523
    %1688 = vmatprep.subr.mxu0 %v528
    %1689 = vmatpush1.msra.mxu0 %v527
    %1690 = vmatprep.subr.mxu0 %v532
    %1691 = vmatpush1.msra.mxu0 %v531
    %1692 = vmatprep.subr.mxu0 %v536
    %1693 = vmatpush1.msra.mxu0 %v535
    %1694 = vmatprep.subr.mxu0 %v540
    %1695 = vmatpush1.msra.mxu0 %v539
    %1696 = vmatprep.subr.mxu0 %v544
    %1697 = vmatpush1.msra.mxu0 %v543
    %1698 = vmatprep.subr.mxu0 0.0
    %1699 = vmatpush1.msra.mxu0 0.0
    %1700 = vmatprep.subr.mxu0 0.0
    %1701 = vmatpush1.msra.mxu0 0.0
    %1702 = vmatprep.subr.mxu0 0.0
    %1703 = vmatpush1.msra.mxu0 0.0
    %1704 = vmatprep.subr.mxu0 0.0
    %1705 = vmatpush1.msra.mxu0 0.0
    %1706 = vmatprep.subr.mxu0 0.0
    %1707 = vmatpush1.msra.mxu0 0.0
    %1708 = vmatprep.subr.mxu0 0.0
    %1709 = vmatpush1.msra.mxu0 0.0
    %1710 = vmatprep.subr.mxu0 0.0
    %1711 = vmatpush1.msra.mxu0 0.0
    %1712 = vmatprep.subr.mxu0 0.0
    %1713 = vmatpush1.msra.mxu0 0.0
    %1714 = vmatprep.subr.mxu0 0.0
    %1715 = vmatpush1.msra.mxu0 0.0
    %1716 = vmatprep.subr.mxu0 0.0
    %1717 = vmatpush1.msra.mxu0 0.0
    %1718 = vmatprep.subr.mxu0 0.0
    %1719 = vmatpush1.msra.mxu0 0.0
    %1720 = vmatprep.subr.mxu0 0.0
    %1721 = vmatpush1.msra.mxu0 0.0
    %1722 = vmatprep.subr.mxu0 0.0
    %1723 = vmatpush1.msra.mxu0 0.0
    %1724 = vmatprep.subr.mxu0 0.0
    %1725 = vmatpush1.msra.mxu0 0.0
    %1726 = vmatprep.subr.mxu0 0.0
    %1727 = vmatpush1.msra.mxu0 0.0
    %1728 = vmatprep.subr.mxu0 0.0
    %1729 = vmatpush1.msra.mxu0 0.0
    %1730 = vmatprep.mubr.f32.mxu0 0.0
    %1731 = vmatmul.mubr.f32.gmra.mrb[0].mxu0 %v1589
    %v1732 = vpop.f32.mrb[0].mxu0
    %v1733 = vadd.f32 0.0, %v1732
    %v1734 = vpop.f32.mrb[0].mxu0
    %v1735 = vadd.f32 0.0, %v1734
    %1736 = vdwg.mxu0
    %v1737 = vadd.f32 %v1591, %v1662
    %v1738 = vadd.f32 %v1592, %v1664
    %v1739 = vadd.f32 %v1593, %v1733
    %v1740 = vadd.f32 %v1594, %v1735
    %v1741 = vxor.u32 %v1737, 2147483648
    %v1742 = vxor.u32 %v1738, 2147483648
    %v1743 = vxor.u32 %v1739, 2147483648
    %v1744 = vmul.f32 %v1741, 1.442695
    %v1745 = vpow.pop %v1744
    %v1746 = vmul.f32 %v1742, 1.442695
    %v1747 = vpow.pop %v1746
    %v1748 = vmul.f32 %v1743, 1.442695
    %v1749 = vpow.pop %v1748
    %v1750 = vadd.f32 %v1745, 1.0
    %v1751 = vadd.f32 %v1747, 1.0
    %v1752 = vadd.f32 %v1749, 1.0
    %v1753 = vrcp.pop %v1750
    %v1754 = vmul.f32 1.0, %v1753
    %v1755 = vrcp.pop %v1751
    %v1756 = vmul.f32 1.0, %v1755
    %v1757 = vrcp.pop %v1752
    %v1758 = vmul.f32 1.0, %v1757
    %v1759 = vtanh.pop %v1740
    %v1760 = vmul.f32 %v1756, %v1587
    %v1761 = vmul.f32 %v1754, %v1759
    %v1762 = vadd.f32 %v1760, %v1761
    %v1763 = vtanh.pop %v1762
    %v1764 = vmul.f32 %v1758, %v1763
    %1765 = vst [vmem:[%s4] sm:$0xff] %v1764
    // Predicated region
    $region22: #{encoder_forward.1} parent=1 // pred_check
      _
    $region23: #{encoder_forward.1} parent=1 // pred_check_branch
      %1767 = sbr.rel (0) target = $region25
    $region24: #{encoder_forward.1} parent=1 // pred_region
      _
    $region25: #{encoder_forward.1} parent=1 // pred_fallthru
      _
    // Predicated region
    $region26: #{encoder_forward.1} parent=1 // pred_check
      _
    $region27: #{encoder_forward.1} parent=1 // pred_check_branch
      %1769 = sbr.rel (0) target = $region29
    $region28: #{encoder_forward.1} parent=1 // pred_region
      _
    $region29: #{encoder_forward.1} parent=1 // pred_fallthru
      _
    %1770 = vsyncpa [#allocation4], 1

</llo_original>
